<compile_context>
chip_gen: v5e
topology: v5e:2x2
jax: 0.10.0
libtpu: 0.0.40
codegen_flags: <defaults>
</compile_context>

<pallas_src>
import functools

import jax
import jax.numpy as jnp
from jax import lax
from jax.experimental import pallas as pl
from jax.experimental.pallas import tpu as pltpu


def _projection_head_kernel(x_ref, w1_ref, b1_ref, w2_ref, b2_ref, o_ref, *, width):
    """One (image, pixel-tile) grid step.

    x_ref : (1, C_in, Tpix)  -- Tpix contiguous pixels (row-major over H*W) of one image
    w1_ref: (C_in, C_in)        b1_ref: (C_in, 1)
    w2_ref: (P, C_in)           b2_ref: (P, 1)
    o_ref : (1, P, Tpix)
    Tpix is a multiple of `width`, so every width-row is fully contained in the tile.
    """
    x = x_ref[0]                      # (C_in, Tpix)
    tpix = x.shape[-1]
    n_rows = tpix // width            # number of whole width-rows in this tile

    # 1x1 conv #1 + bias + ReLU  (Mosaic dot lowering supports DEFAULT/HIGHEST only;
    # these contractions are tiny, so HIGHEST is essentially free here.)
    h = jnp.dot(w1_ref[...], x, preferred_element_type=jnp.float32,
                precision=lax.Precision.HIGHEST) + b1_ref[...]
    h = jnp.maximum(h, 0.0)

    # 1x1 conv #2 + bias
    y = jnp.dot(w2_ref[...], h, preferred_element_type=jnp.float32,
                precision=lax.Precision.HIGHEST) + b2_ref[...]            # (P, Tpix)

    # Per-width-row L2 norm: collapse (segmented sum of squares) -> rsqrt -> expand.
    # 0/1 selector matrices built in-kernel from iota compares (no integer division,
    # no HBM traffic, no big VMEM block).  collapse[i, r] = 1 iff pixel i is in row r;
    # expand is its transpose, built directly to avoid an XLU transpose.
    pix_c = lax.broadcasted_iota(jnp.int32, (tpix, n_rows), 0)
    row_c = lax.broadcasted_iota(jnp.int32, (tpix, n_rows), 1) * width
    collapse = ((pix_c >= row_c) & (pix_c < row_c + width)).astype(jnp.float32)

    row_e = lax.broadcasted_iota(jnp.int32, (n_rows, tpix), 0) * width
    pix_e = lax.broadcasted_iota(jnp.int32, (n_rows, tpix), 1)
    expand = ((pix_e >= row_e) & (pix_e < row_e + width)).astype(jnp.float32)

    ssq = jnp.dot(y * y, collapse, preferred_element_type=jnp.float32,
                  precision=lax.Precision.HIGHEST)                         # (P, n_rows)
    # ssq clamp at 1e-24 == PyTorch F.normalize's clamp_min(norm, 1e-12) (all-f32 path).
    inv = lax.rsqrt(jnp.maximum(ssq, 1e-24))                               # (P, n_rows)
    inv_full = jnp.dot(inv, expand, preferred_element_type=jnp.float32,
                       precision=lax.Precision.HIGHEST)                    # (P, Tpix)

    o_ref[0] = (y * inv_full).astype(o_ref.dtype)


def _choose_pixel_tile(hw, w, n_images, c_in, p,
                       cap=8192, vmem_budget=40 * 1024 * 1024):
    """Tile size over the flattened H*W pixel axis.

    A legal tile divides HW, holds whole width-rows (multiple of W), and is either a
    multiple of 128 (lane-dense stores) or the full HW extent (always a legal block).
    Take the largest legal tile that fits the per-step VMEM budget and the cap; if none
    qualifies, fall back to the smallest legal tile (at worst the full HW extent).  Then,
    if the whole grid would have < 2 steps, split once more so both v7x TCs get work.
    """
    def footprint(t):
        n_rows = t // w
        return 4 * (2 * c_in * t            # double-buffered input block
                    + 2 * p * t             # double-buffered output block
                    + (c_in + 3 * p) * t    # h, y, y*y, inv_full temporaries
                    + 2 * t * n_rows)       # in-kernel collapse/expand selector matrices

    legal = [d for d in range(w, hw + 1, w)
             if hw % d == 0 and (d % 128 == 0 or d == hw)]
    good = [d for d in legal if d <= cap and footprint(d) <= vmem_budget]
    tpix = max(good) if good else min(legal)
    if n_images * (hw // tpix) < 2:          # keep the second TensorCore (v7x) busy
        smaller = [d for d in legal if d <= hw // 2]
        if smaller:
            tpix = max(smaller)
    return tpix


def projection_head_forward(x_nchw, w1, b1, w2, b2):
    """x_nchw: (N, C_in, H, W) float32.  Returns (N, P, H, W) float32."""
    N, C_in, H, W = x_nchw.shape
    P = w2.shape[0]
    HW = H * W

    tpix = _choose_pixel_tile(HW, W, N, C_in, P)
    n_tiles = HW // tpix

    # Free views of the contiguous NCHW buffer -- no HBM transposes.
    x_flat = x_nchw.reshape(N, C_in, HW)
    b1_2d = b1.reshape(C_in, 1)
    b2_2d = b2.reshape(P, 1)

    kernel = functools.partial(_projection_head_kernel, width=W)

    out_flat = pl.pallas_call(
        kernel,
        out_shape=jax.ShapeDtypeStruct((N, P, HW), jnp.float32),
        grid_spec=pltpu.PrefetchScalarGridSpec(
            num_scalar_prefetch=0,
            grid=(N, n_tiles),
            in_specs=[
                pl.BlockSpec((1, C_in, tpix), lambda n, j: (n, 0, j)),
                pl.BlockSpec((C_in, C_in), lambda n, j: (0, 0)),
                pl.BlockSpec((C_in, 1), lambda n, j: (0, 0)),
                pl.BlockSpec((P, C_in), lambda n, j: (0, 0)),
                pl.BlockSpec((P, 1), lambda n, j: (0, 0)),
            ],
            out_specs=pl.BlockSpec((1, P, tpix), lambda n, j: (n, 0, j)),
        ),
        compiler_params=pltpu.CompilerParams(
            dimension_semantics=("parallel", "parallel"),
            vmem_limit_bytes=48 * 1024 * 1024,   # explicit, safe on v5e/v6e/v7x
        ),
    )(x_flat, w1, b1_2d, w2, b2_2d)

    # Free view back to NPHW.
    return out_flat.reshape(N, P, H, W)


def _reference(x_nchw, w1, b1, w2, b2):
    # pure-JAX f32 reference for the PyTorch forward (HIGHEST so the reference itself
    # is not degraded by TPU default bf16 matmul passes).
    h = jnp.einsum("oc,nchw->nohw", w1, x_nchw,
                   precision=lax.Precision.HIGHEST) + b1[None, :, None, None]
    h = jnp.maximum(h, 0.0)
    y = jnp.einsum("oc,nchw->nohw", w2, h,
                   precision=lax.Precision.HIGHEST) + b2[None, :, None, None]
    norm = jnp.maximum(jnp.linalg.norm(y, axis=-1, keepdims=True), 1e-12)
    return y / norm


if __name__ == "__main__":
    # small shapes consistent with the module
    N, C_in, H, W = 2, 4, 16, 16
    proj_dim = 32

    key = jax.random.PRNGKey(0)
    kx, kw1, kb1, kw2, kb2 = jax.random.split(key, 5)

    x = jax.random.normal(kx, (N, C_in, H, W), dtype=jnp.float32)

    # Conv2d 1x1 weights have shape (out, in, 1, 1) -> stored as (out, in)
    w1 = 0.1 * jax.random.normal(kw1, (C_in, C_in), dtype=jnp.float32)
    b1 = 0.1 * jax.random.normal(kb1, (C_in,), dtype=jnp.float32)
    w2 = 0.1 * jax.random.normal(kw2, (proj_dim, C_in), dtype=jnp.float32)
    b2 = 0.1 * jax.random.normal(kb2, (proj_dim,), dtype=jnp.float32)

    out = projection_head_forward(x, w1, b1, w2, b2)
    out = jax.block_until_ready(out)

    ref = _reference(x, w1, b1, w2, b2)
    assert out.shape == (N, proj_dim, H, W)
    assert jnp.allclose(out, ref, atol=1e-5, rtol=1e-5), "mismatch vs reference"

    print("KERNEL_OK")
</pallas_src>

<mosaic_0001>
module attributes {stable_mosaic.version = 11 : i64} {
  func.func @_projection_head_kernel(%arg0: i32, %arg1: i32, %arg2: memref<1x4x256xf32, #tpu.memory_space<vmem>>, %arg3: memref<4x4xf32, #tpu.memory_space<vmem>>, %arg4: memref<4x1xf32, #tpu.memory_space<vmem>>, %arg5: memref<32x4xf32, #tpu.memory_space<vmem>>, %arg6: memref<32x1xf32, #tpu.memory_space<vmem>>, %arg7: memref<1x32x256xf32, #tpu.memory_space<vmem>>) attributes {dimension_semantics = [#tpu.dimension_semantics<parallel>, #tpu.dimension_semantics<parallel>], iteration_bounds = array<i64: 2, 1>, scalar_prefetch = 0 : i64, scratch_operands = 0 : i64, tpu.core_type = #tpu.core_type<tc>, window_params = [{transform_indices = @transform_0, window_bounds = array<i64: 1, 4, 256>}, {pipeline_mode = #tpu.pipeline_mode<synchronous>, transform_indices = @transform_1, window_bounds = array<i64: 4, 4>}, {pipeline_mode = #tpu.pipeline_mode<synchronous>, transform_indices = @transform_2, window_bounds = array<i64: 4, 1>}, {pipeline_mode = #tpu.pipeline_mode<synchronous>, transform_indices = @transform_3, window_bounds = array<i64: 32, 4>}, {pipeline_mode = #tpu.pipeline_mode<synchronous>, transform_indices = @transform_4, window_bounds = array<i64: 32, 1>}, {transform_indices = @transform_5, window_bounds = array<i64: 1, 32, 256>}]} {
    %c0 = arith.constant 0 : index
    %c0_0 = arith.constant 0 : index
    %c0_1 = arith.constant 0 : index
    %0 = vector.load %arg2[%c0, %c0_0, %c0_1] : memref<1x4x256xf32, #tpu.memory_space<vmem>>, vector<1x4x256xf32>
    %1 = vector.shape_cast %0 : vector<1x4x256xf32> to vector<4x256xf32>
    %c0_2 = arith.constant 0 : index
    %c0_3 = arith.constant 0 : index
    %2 = vector.load %arg3[%c0_2, %c0_3] : memref<4x4xf32, #tpu.memory_space<vmem>>, vector<4x4xf32>
    %cst = arith.constant dense<0.000000e+00> : vector<4x256xf32>
    %3 = tpu.matmul %2, %1, %cst {dimension_numbers = #tpu.dot_dimension_numbers<[1], [0], [0], [1], [0, 0, 1, 1], [], []>, precision = #tpu.contract_precision<fp32>} : vector<4x4xf32>, vector<4x256xf32>, vector<4x256xf32> -> vector<4x256xf32>
    %c0_4 = arith.constant 0 : index
    %c0_5 = arith.constant 0 : index
    %4 = vector.load %arg4[%c0_4, %c0_5] : memref<4x1xf32, #tpu.memory_space<vmem>>, vector<4x1xf32>
    %5 = vector.broadcast %4 : vector<4x1xf32> to vector<4x256xf32>
    %6 = arith.addf %3, %5 : vector<4x256xf32>
    %cst_6 = arith.constant 0.000000e+00 : f32
    %7 = vector.broadcast %cst_6 : f32 to vector<4x256xf32>
    %8 = arith.maximumf %6, %7 : vector<4x256xf32>
    %c0_7 = arith.constant 0 : index
    %c0_8 = arith.constant 0 : index
    %9 = vector.load %arg5[%c0_7, %c0_8] : memref<32x4xf32, #tpu.memory_space<vmem>>, vector<32x4xf32>
    %cst_9 = arith.constant dense<0.000000e+00> : vector<32x256xf32>
    %10 = tpu.matmul %9, %8, %cst_9 {dimension_numbers = #tpu.dot_dimension_numbers<[1], [0], [0], [1], [0, 0, 1, 1], [], []>, precision = #tpu.contract_precision<fp32>} : vector<32x4xf32>, vector<4x256xf32>, vector<32x256xf32> -> vector<32x256xf32>
    %c0_10 = arith.constant 0 : index
    %c0_11 = arith.constant 0 : index
    %11 = vector.load %arg6[%c0_10, %c0_11] : memref<32x1xf32, #tpu.memory_space<vmem>>, vector<32x1xf32>
    %12 = vector.broadcast %11 : vector<32x1xf32> to vector<32x256xf32>
    %13 = arith.addf %10, %12 : vector<32x256xf32>
    %14 = tpu.iota {dimensions = array<i32: 0>} : vector<256x16xi32>
    %15 = tpu.iota {dimensions = array<i32: 1>} : vector<256x16xi32>
    %c16_i32 = arith.constant 16 : i32
    %16 = vector.broadcast %c16_i32 : i32 to vector<256x16xi32>
    %17 = arith.muli %15, %16 : vector<256x16xi32>
    %18 = arith.cmpi sge, %14, %17 : vector<256x16xi32>
    %c16_i32_12 = arith.constant 16 : i32
    %19 = vector.broadcast %c16_i32_12 : i32 to vector<256x16xi32>
    %20 = arith.addi %17, %19 : vector<256x16xi32>
    %21 = arith.cmpi slt, %14, %20 : vector<256x16xi32>
    %22 = arith.andi %18, %21 : vector<256x16xi1>
    %23 = arith.extui %22 : vector<256x16xi1> to vector<256x16xi32>
    %24 = arith.sitofp %23 : vector<256x16xi32> to vector<256x16xf32>
    %25 = tpu.iota {dimensions = array<i32: 0>} : vector<16x256xi32>
    %c16_i32_13 = arith.constant 16 : i32
    %26 = vector.broadcast %c16_i32_13 : i32 to vector<16x256xi32>
    %27 = arith.muli %25, %26 : vector<16x256xi32>
    %28 = tpu.iota {dimensions = array<i32: 1>} : vector<16x256xi32>
    %29 = arith.cmpi sge, %28, %27 : vector<16x256xi32>
    %c16_i32_14 = arith.constant 16 : i32
    %30 = vector.broadcast %c16_i32_14 : i32 to vector<16x256xi32>
    %31 = arith.addi %27, %30 : vector<16x256xi32>
    %32 = arith.cmpi slt, %28, %31 : vector<16x256xi32>
    %33 = arith.andi %29, %32 : vector<16x256xi1>
    %34 = arith.extui %33 : vector<16x256xi1> to vector<16x256xi32>
    %35 = arith.sitofp %34 : vector<16x256xi32> to vector<16x256xf32>
    %36 = arith.mulf %13, %13 : vector<32x256xf32>
    %cst_15 = arith.constant dense<0.000000e+00> : vector<32x16xf32>
    %37 = tpu.matmul %36, %24, %cst_15 {dimension_numbers = #tpu.dot_dimension_numbers<[1], [0], [0], [1], [0, 0, 1, 1], [], []>, precision = #tpu.contract_precision<fp32>} : vector<32x256xf32>, vector<256x16xf32>, vector<32x16xf32> -> vector<32x16xf32>
    %cst_16 = arith.constant 1.000000e-24 : f32
    %38 = vector.broadcast %cst_16 : f32 to vector<32x16xf32>
    %39 = arith.maximumf %37, %38 : vector<32x16xf32>
    %40 = math.rsqrt %39 : vector<32x16xf32>
    %cst_17 = arith.constant dense<0.000000e+00> : vector<32x256xf32>
    %41 = tpu.matmul %40, %35, %cst_17 {dimension_numbers = #tpu.dot_dimension_numbers<[1], [0], [0], [1], [0, 0, 1, 1], [], []>, precision = #tpu.contract_precision<fp32>} : vector<32x16xf32>, vector<16x256xf32>, vector<32x256xf32> -> vector<32x256xf32>
    %42 = arith.mulf %13, %41 : vector<32x256xf32>
    %c0_18 = arith.constant 0 : index
    %c0_19 = arith.constant 0 : index
    %c0_20 = arith.constant 0 : index
    %43 = vector.load %arg7[%c0_18, %c0_19, %c0_20] : memref<1x32x256xf32, #tpu.memory_space<vmem>>, vector<1x32x256xf32>
    %44 = vector.shape_cast %43 : vector<1x32x256xf32> to vector<32x256xf32>
    %45 = vector.shape_cast %42 : vector<32x256xf32> to vector<1x32x256xf32>
    tpu.vector_store %arg7[%c0_18, %c0_19, %c0_20], %45 {strides = array<i32>} : memref<1x32x256xf32, #tpu.memory_space<vmem>>, vector<1x32x256xf32>,
    return
  }
  func.func @transform_0(%arg0: i32, %arg1: i32) -> (i32, i32, i32) {
    %c0_i32 = arith.constant 0 : i32
    %c0_i32_0 = arith.constant 0 : i32
    return %arg0, %c0_i32, %arg1 : i32, i32, i32
  }
  func.func @transform_1(%arg0: i32, %arg1: i32) -> (i32, i32) {
    %c0_i32 = arith.constant 0 : i32
    %c0_i32_0 = arith.constant 0 : i32
    %c0_i32_1 = arith.constant 0 : i32
    return %c0_i32, %c0_i32_0 : i32, i32
  }
  func.func @transform_2(%arg0: i32, %arg1: i32) -> (i32, i32) {
    %c0_i32 = arith.constant 0 : i32
    %c0_i32_0 = arith.constant 0 : i32
    %c0_i32_1 = arith.constant 0 : i32
    return %c0_i32, %c0_i32_0 : i32, i32
  }
  func.func @transform_3(%arg0: i32, %arg1: i32) -> (i32, i32) {
    %c0_i32 = arith.constant 0 : i32
    %c0_i32_0 = arith.constant 0 : i32
    %c0_i32_1 = arith.constant 0 : i32
    return %c0_i32, %c0_i32_0 : i32, i32
  }
  func.func @transform_4(%arg0: i32, %arg1: i32) -> (i32, i32) {
    %c0_i32 = arith.constant 0 : i32
    %c0_i32_0 = arith.constant 0 : i32
    %c0_i32_1 = arith.constant 0 : i32
    return %c0_i32, %c0_i32_0 : i32, i32
  }
  func.func @transform_5(%arg0: i32, %arg1: i32) -> (i32, i32, i32) {
    %c0_i32 = arith.constant 0 : i32
    %c0_i32_0 = arith.constant 0 : i32
    return %arg0, %c0_i32, %arg1 : i32, i32, i32
  }
}

</mosaic_0001>

<llo_original>
// kernel: tpu_custom_call.1
$region0: #{tpu_custom_call.1}
  #allocation0 [shape = 'u32[]', space=smem, size = 0x4, offset = 0x4, fixed_abs, tag = 'smem constant byte address 0x4 - core index']
  #allocation1 [shape = 'u32[72,128]{1,0:T(1,128)}', space=vmem, size = 0x9000, scoped, tag = 'internal scratch']
  %s0 = inlined_call_operand.vmem [shape: f32[2,4,256], index: 0, kind: input, shape index: {}]
  %s1 = inlined_call_operand.vmem [shape: f32[4,4], index: 1, kind: input, shape index: {}]
  %s2 = inlined_call_operand.vmem [shape: f32[4,1], index: 2, kind: input, shape index: {}]
  %s3 = inlined_call_operand.vmem [shape: f32[32,4], index: 3, kind: input, shape index: {}]
  %s4 = inlined_call_operand.vmem [shape: f32[32,1], index: 4, kind: input, shape index: {}]
  %s5 = inlined_call_operand.hbm [shape: f32[2,32,256], index: 5, kind: output, shape index: {}]
  %s6 = sld [smem:[#allocation0]]
  $region53: #{tpu_custom_call.1} parent=0
    _
  %s8 = ssub.s32 1, %s6
  %s9 = scalar_select 0, %s8, %s6
  $region1: #{tpu_custom_call.1} parent=0
    #allocation2 [shape = 'u8[65536]{0}', space=vmem, size = 0x10000, scoped, tag = 'output window, operand 0']
    #allocation3 [shape = 's32[2]{0}', space=sflag, size = 0x8, scoped, tag = 'scoped memory for tpu_custom_call.1']
    %10 = vsyncpa [#allocation3], 0
    %s11 = scalar_lea.sflag [#allocation3], 1
    %12 = vsyncpa %s11, 0
    loop: start=0, step=1, limit=4
    $region2: #{tpu_custom_call.1} parent=1 // loop_pre_header
      _
    $region3: #{tpu_custom_call.1} parent=1 // loop_header
      %s14 = sphi 0, %s18
      %p15 = scmp.ge.s32.totalorder %s14, 4
      %s21 = sphi 0, %s33
      %s22 = sphi 0, %s29
      %s23 = sphi 0, %s21
      %s24 = sphi 0, %s22
      %s25 = sphi 0, %s23
      %s26 = sphi 0, %s24
      %s38 = sphi 0, %s40
      %s41 = sphi 0, %s38
      %s42 = sphi 0, %s41
      %s58 = sphi 0, %s42
      %s62 = sphi 0, %s62
      %s64 = sphi 0, %s62
      %s65 = sphi 0, %s64
      %s79 = sphi 0, %s65
      %s83 = sphi 0, %s83
      %s85 = sphi 0, %s83
      %s86 = sphi 0, %s85
      %s100 = sphi 0, %s86
      %s104 = sphi 0, %s104
      %s106 = sphi 0, %s104
      %s107 = sphi 0, %s106
      %s121 = sphi 0, %s107
      %s125 = sphi 0, %s125
      %s127 = sphi 0, %s125
      %s128 = sphi 0, %s127
      %s142 = sphi 0, %s128
      %s150 = sphi 0, %s152
      %s153 = sphi 0, %s150
      %s154 = sphi 0, %s153
      %s170 = sphi 0, %s154
    $region4: #{tpu_custom_call.1} parent=1 // loop_header_branch
      %17 = sbr.rel (%p15) target = $region8
    $region5: #{tpu_custom_call.1} parent=1 // loop_body
      %s19 = ssub.s32 %s14, 1
      %s20 = ssub.s32 %s14, 2
      %s27 = sadd.s32 1, %s22
      %p28 = scmp.ge.s32.totalorder %s27, 1
      %s29 = scalar_select %p28, 0, %s27
      %s30 = sadd.s32 1, %s21
      %s31 = scalar_select %p28, %s30, %s21
      %p32 = scmp.ge.s32.totalorder %s31, 2
      %s33 = scalar_select %p32, 0, %s31
      %s34 = ssub.s32 %s21, %s33
      %s35 = ssub.s32 %s22, %s29
      %s36 = sor.u32 %s34, %s35
      %p37 = scmp.eq.s32.totalorder %s36, 0
      %s39 = sadd.s32 %s38, 1
      %s40 = scalar_select %p37, %s38, %s39
      %p43 = pneg %p37
      %p44 = scmp.eq.s32.totalorder %s14, 1
      %p45 = por %p43, %p44
      %p46 = scmp.ne.s32.totalorder %s38, %s41
      %p47 = scmp.eq.s32.totalorder %s14, 0
      %p48 = por %p46, %p47
      %p49 = scmp.ne.s32.totalorder %s38, %s41
      %p50 = scmp.eq.s32.totalorder %s19, 1
      %p51 = por %p49, %p50
      %p52 = scmp.ne.s32.totalorder %s41, %s42
      %p53 = scmp.eq.s32.totalorder %s19, 0
      %p54 = por %p52, %p53
      %p55 = scmp.ne.s32.totalorder %s41, %s42
      %p56 = scmp.eq.s32.totalorder %s20, 1
      %p57 = por %p55, %p56
      %p59 = scmp.ne.s32.totalorder %s42, %s58
      %p60 = scmp.eq.s32.totalorder %s20, 0
      %p61 = por %p59, %p60
      %s63 = sadd.s32 %s62, 1
      %p66 = scmp.eq.s32.totalorder %s14, 1
      %p67 = scmp.ne.s32.totalorder %s62, %s64
      %p68 = scmp.eq.s32.totalorder %s14, 0
      %p69 = por %p67, %p68
      %p70 = scmp.ne.s32.totalorder %s62, %s64
      %p71 = scmp.eq.s32.totalorder %s19, 1
      %p72 = por %p70, %p71
      %p73 = scmp.ne.s32.totalorder %s64, %s65
      %p74 = scmp.eq.s32.totalorder %s19, 0
      %p75 = por %p73, %p74
      %p76 = scmp.ne.s32.totalorder %s64, %s65
      %p77 = scmp.eq.s32.totalorder %s20, 1
      %p78 = por %p76, %p77
      %p80 = scmp.ne.s32.totalorder %s65, %s79
      %p81 = scmp.eq.s32.totalorder %s20, 0
      %p82 = por %p80, %p81
      %s84 = sadd.s32 %s83, 1
      %p87 = scmp.eq.s32.totalorder %s14, 1
      %p88 = scmp.ne.s32.totalorder %s83, %s85
      %p89 = scmp.eq.s32.totalorder %s14, 0
      %p90 = por %p88, %p89
      %p91 = scmp.ne.s32.totalorder %s83, %s85
      %p92 = scmp.eq.s32.totalorder %s19, 1
      %p93 = por %p91, %p92
      %p94 = scmp.ne.s32.totalorder %s85, %s86
      %p95 = scmp.eq.s32.totalorder %s19, 0
      %p96 = por %p94, %p95
      %p97 = scmp.ne.s32.totalorder %s85, %s86
      %p98 = scmp.eq.s32.totalorder %s20, 1
      %p99 = por %p97, %p98
      %p101 = scmp.ne.s32.totalorder %s86, %s100
      %p102 = scmp.eq.s32.totalorder %s20, 0
      %p103 = por %p101, %p102
      %s105 = sadd.s32 %s104, 1
      %p108 = scmp.eq.s32.totalorder %s14, 1
      %p109 = scmp.ne.s32.totalorder %s104, %s106
      %p110 = scmp.eq.s32.totalorder %s14, 0
      %p111 = por %p109, %p110
      %p112 = scmp.ne.s32.totalorder %s104, %s106
      %p113 = scmp.eq.s32.totalorder %s19, 1
      %p114 = por %p112, %p113
      %p115 = scmp.ne.s32.totalorder %s106, %s107
      %p116 = scmp.eq.s32.totalorder %s19, 0
      %p117 = por %p115, %p116
      %p118 = scmp.ne.s32.totalorder %s106, %s107
      %p119 = scmp.eq.s32.totalorder %s20, 1
      %p120 = por %p118, %p119
      %p122 = scmp.ne.s32.totalorder %s107, %s121
      %p123 = scmp.eq.s32.totalorder %s20, 0
      %p124 = por %p122, %p123
      %s126 = sadd.s32 %s125, 1
      %p129 = scmp.eq.s32.totalorder %s14, 1
      %p130 = scmp.ne.s32.totalorder %s125, %s127
      %p131 = scmp.eq.s32.totalorder %s14, 0
      %p132 = por %p130, %p131
      %p133 = scmp.ne.s32.totalorder %s125, %s127
      %p134 = scmp.eq.s32.totalorder %s19, 1
      %p135 = por %p133, %p134
      %p136 = scmp.ne.s32.totalorder %s127, %s128
      %p137 = scmp.eq.s32.totalorder %s19, 0
      %p138 = por %p136, %p137
      %p139 = scmp.ne.s32.totalorder %s127, %s128
      %p140 = scmp.eq.s32.totalorder %s20, 1
      %p141 = por %p139, %p140
      %p143 = scmp.ne.s32.totalorder %s128, %s142
      %p144 = scmp.eq.s32.totalorder %s20, 0
      %p145 = por %p143, %p144
      %s146 = ssub.s32 %s21, %s33
      %s147 = ssub.s32 %s22, %s29
      %s148 = sor.u32 %s146, %s147
      %p149 = scmp.eq.s32.totalorder %s148, 0
      %s151 = sadd.s32 %s150, 1
      %s152 = scalar_select %p149, %s150, %s151
      %p155 = pneg %p149
      %p156 = scmp.eq.s32.totalorder %s14, 1
      %p157 = por %p155, %p156
      %p158 = scmp.ne.s32.totalorder %s150, %s153
      %p159 = scmp.eq.s32.totalorder %s14, 0
      %p160 = por %p158, %p159
      %p161 = scmp.ne.s32.totalorder %s150, %s153
      %p162 = scmp.eq.s32.totalorder %s19, 1
      %p163 = por %p161, %p162
      %p164 = scmp.ne.s32.totalorder %s153, %s154
      %p165 = scmp.eq.s32.totalorder %s19, 0
      %p166 = por %p164, %p165
      %p167 = scmp.ne.s32.totalorder %s153, %s154
      %p168 = scmp.eq.s32.totalorder %s20, 1
      %p169 = por %p167, %p168
      %p171 = scmp.ne.s32.totalorder %s154, %s170
      %p172 = scmp.eq.s32.totalorder %s20, 0
      %p173 = por %p171, %p172
      %p174 = scmp.le.s32.totalorder 1, %s14
      %p175 = scmp.lt.s32.totalorder %s14, 3
      %p176 = pnand %p174, %p175
      %p177 = pneg %p176
      // Predicated region
      $region9: #{tpu_custom_call.1} parent=5 // pred_check
        _
      $region10: #{tpu_custom_call.1} parent=5 // pred_check_branch
        %179 = sbr.rel (%p176) target = $region12
      $region11: #{tpu_custom_call.1} parent=5 // pred_region
        %s180 = ssub.s32 %s14, 1
        // Predicated region
        $region13: #{tpu_custom_call.1} parent=11 // pred_check
          %p181 = pneg %p75
        $region14: #{tpu_custom_call.1} parent=11 // pred_check_branch
          %183 = sbr.rel (%p181) target = $region16
        $region15: #{tpu_custom_call.1} parent=11 // pred_region
          _
        $region16: #{tpu_custom_call.1} parent=11 // pred_fallthru
          _
        // Predicated region
        $region17: #{tpu_custom_call.1} parent=11 // pred_check
          %p184 = pneg %p96
        $region18: #{tpu_custom_call.1} parent=11 // pred_check_branch
          %186 = sbr.rel (%p184) target = $region20
        $region19: #{tpu_custom_call.1} parent=11 // pred_region
          _
        $region20: #{tpu_custom_call.1} parent=11 // pred_fallthru
          _
        // Predicated region
        $region21: #{tpu_custom_call.1} parent=11 // pred_check
          %p187 = pneg %p117
        $region22: #{tpu_custom_call.1} parent=11 // pred_check_branch
          %189 = sbr.rel (%p187) target = $region24
        $region23: #{tpu_custom_call.1} parent=11 // pred_region
          _
        $region24: #{tpu_custom_call.1} parent=11 // pred_fallthru
          _
        // Predicated region
        $region25: #{tpu_custom_call.1} parent=11 // pred_check
          %p190 = pneg %p138
        $region26: #{tpu_custom_call.1} parent=11 // pred_check_branch
          %192 = sbr.rel (%p190) target = $region28
        $region27: #{tpu_custom_call.1} parent=11 // pred_region
          _
        $region28: #{tpu_custom_call.1} parent=11 // pred_fallthru
          _
      $region12: #{tpu_custom_call.1} parent=5 // pred_fallthru
        _
      %p193 = scmp.lt.s32.totalorder %s14, 2
      // Predicated region
      $region29: #{tpu_custom_call.1} parent=5 // pred_check
        %p194 = pneg %p193
      $region30: #{tpu_custom_call.1} parent=5 // pred_check_branch
        %196 = sbr.rel (%p194) target = $region32
      $region31: #{tpu_custom_call.1} parent=5 // pred_region
        // Predicated region
        $region33: #{tpu_custom_call.1} parent=31 // pred_check
          %p197 = pneg %p48
        $region34: #{tpu_custom_call.1} parent=31 // pred_check_branch
          %199 = sbr.rel (%p197) target = $region36
        $region35: #{tpu_custom_call.1} parent=31 // pred_region
          %s200 = smul.u32 2, %s22
          %p201 = scmp.lt.s32.totalorder %s21, 1
          %s202 = scalar_select %p201, %s21, 1
          %p203 = scmp.lt.s32.totalorder %s200, 1
          %s204 = scalar_select %p203, %s200, 1
          %s205 = smul.addr %s202, 2
          %s206 = sadd.s32 %s204, %s205
          %s207 = smul.addr %s206, 4
          %s208 = scalar_lea.vmem %s0, %s207
          %s209 = smul.u32 2, %s22
        $region36: #{tpu_custom_call.1} parent=31 // pred_fallthru
          _
      $region32: #{tpu_custom_call.1} parent=5 // pred_fallthru
        _
      %p210 = scmp.le.s32.totalorder 1, %s14
      %p211 = scmp.lt.s32.totalorder %s14, 3
      %p212 = pnand %p210, %p211
      %p213 = pneg %p212
      // Predicated region
      $region37: #{tpu_custom_call.1} parent=5 // pred_check
        _
      $region38: #{tpu_custom_call.1} parent=5 // pred_check_branch
        %215 = sbr.rel (%p212) target = $region40
      $region39: #{tpu_custom_call.1} parent=5 // pred_region
        %s216 = ssub.s32 %s14, 1
        %s217 = smul.u32 2, %s24
        %p218 = scmp.lt.s32.totalorder %s23, 1
        %s219 = scalar_select %p218, %s23, 1
        %p220 = scmp.lt.s32.totalorder %s217, 1
        %s221 = scalar_select %p220, %s217, 1
        %s222 = smul.addr %s219, 2
        %s223 = sadd.s32 %s221, %s222
        %s224 = smul.addr %s223, 4
        %s225 = scalar_lea.vmem %s0, %s224
        %p226 = pneg %p54
        %p227 = pneg %p51
        %p228 = pneg %p75
        %p229 = pneg %p72
        %p230 = pneg %p96
        %p231 = pneg %p93
        %p232 = pneg %p117
        %p233 = pneg %p114
        %p234 = pneg %p138
        %p235 = pneg %p135
        %p236 = pneg %p166
        %p237 = pneg %p163
        %s238 = sand.u32 %s153, 1
        %s239 = scalar_lea.sflag [#allocation3], %s238
        %s240 = sand.u32 %s153, 1
        %s241 = smul.addr %s240, 64
        %s242 = scalar_lea.vmem [#allocation2], %s241
        %s243 = smul.u32 2, %s24
        %p244 = scmp.lt.s32.totalorder %s23, 1
        %s245 = scalar_select %p244, %s23, 1
        %p246 = scmp.lt.s32.totalorder %s243, 1
        %s247 = scalar_select %p246, %s243, 1
        %s248 = smul.addr %s245, 2
        %s249 = sadd.s32 %s247, %s248
        %s250 = smul.addr %s249, 4
        %s251 = scalar_lea.vmem %s0, %s250
        %s252 = smul.u32 2, %s24
        %s253 = smul.u32 2, %s24
        %v254 = vld [vmem:[%s251] sm:$0xff]
        %v255 = vld [vmem:[%s1] sm:$0xf]
        %v256 = vld [vmem:[%s2] sm:$0xf]
        %258 = vset.pattern.permute.xlu0 0
        %259 = vperm.xlu0 %258, %v256
        %v260 = vpop.permute.xlu0 %259
        %263 = vst [vmem:[#allocation1] ss:$2 sm:$0xff] %v254
        %v264 = vld.sshfl [vmem:[#allocation1] sm:$0xff pattern:$0x75316420]
        %v265 = vld.sshfl [vmem:[#allocation1 + $0x8] sm:$0xff pattern:$0x75316420]
        %vm266 = vcmask 31744
        %v268 = vsel %vm266, %v255, 0
        %vm270 = vcmask 1043456
        %v271 = vsel %vm270, %v264, 0
        %v273 = vsel %vm270, %v265, 0
        %275 = vmatpush.msra.mxu0 0.0
        %276 = vmatpush.msra.mxu0 0.0
        %277 = vmatpush.msra.mxu0 0.0
        %278 = vmatpush.msra.mxu0 0.0
        %279 = vmatpush.msra.mxu0 0.0
        %280 = vmatpush.msra.mxu0 0.0
        %281 = vmatpush.msra.mxu0 0.0
        %282 = vmatpush.msra.mxu0 0.0
        %283 = vmatpush.msra.mxu0 0.0
        %284 = vmatpush.msra.mxu0 0.0
        %285 = vmatpush.msra.mxu0 0.0
        %286 = vmatpush.msra.mxu0 0.0
        %287 = vmatpush.msra.mxu0 0.0
        %288 = vmatpush.msra.mxu0 0.0
        %289 = vmatpush.msra.mxu0 0.0
        %v290 = vand.u32 %v271, 4294901760
        %291 = vmatpush.msra.mxu0 %v290
        %v292 = vand.u32 %v268, 4294901760
        %v293 = vsub.f32 %v268, %v292
        %v294 = vand.u32 %v293, 4294901760
        %v295 = vsub.f32 %v293, %v294
        %v296 = vand.u32 %v295, 4294901760
        %297 = vmatmul.f32.gmra.mxu0 %v296
        %v298 = vpop.f32.mrf.mxu0
        %v299 = vadd.f32 %v260, %v298
        %300 = vdwg.mxu0
        %301 = vmatpush.msra.mxu0 0.0
        %302 = vmatpush.msra.mxu0 0.0
        %303 = vmatpush.msra.mxu0 0.0
        %304 = vmatpush.msra.mxu0 0.0
        %305 = vmatpush.msra.mxu0 0.0
        %306 = vmatpush.msra.mxu0 0.0
        %307 = vmatpush.msra.mxu0 0.0
        %308 = vmatpush.msra.mxu0 0.0
        %309 = vmatpush.msra.mxu0 0.0
        %310 = vmatpush.msra.mxu0 0.0
        %311 = vmatpush.msra.mxu0 0.0
        %312 = vmatpush.msra.mxu0 0.0
        %313 = vmatpush.msra.mxu0 0.0
        %314 = vmatpush.msra.mxu0 0.0
        %315 = vmatpush.msra.mxu0 0.0
        %v316 = vand.u32 %v271, 4294901760
        %v317 = vsub.f32 %v271, %v316
        %v318 = vand.u32 %v317, 4294901760
        %v319 = vsub.f32 %v317, %v318
        %v320 = vand.u32 %v319, 4294901760
        %321 = vmatpush.msra.mxu0 %v320
        %v322 = vand.u32 %v268, 4294901760
        %323 = vmatmul.f32.gmra.mxu0 %v322
        %v324 = vpop.f32.mrf.mxu0
        %v325 = vadd.f32 %v299, %v324
        %326 = vdwg.mxu0
        %327 = vmatpush.msra.mxu0 0.0
        %328 = vmatpush.msra.mxu0 0.0
        %329 = vmatpush.msra.mxu0 0.0
        %330 = vmatpush.msra.mxu0 0.0
        %331 = vmatpush.msra.mxu0 0.0
        %332 = vmatpush.msra.mxu0 0.0
        %333 = vmatpush.msra.mxu0 0.0
        %334 = vmatpush.msra.mxu0 0.0
        %335 = vmatpush.msra.mxu0 0.0
        %336 = vmatpush.msra.mxu0 0.0
        %337 = vmatpush.msra.mxu0 0.0
        %338 = vmatpush.msra.mxu0 0.0
        %339 = vmatpush.msra.mxu0 0.0
        %340 = vmatpush.msra.mxu0 0.0
        %341 = vmatpush.msra.mxu0 0.0
        %v342 = vand.u32 %v271, 4294901760
        %v343 = vsub.f32 %v271, %v342
        %344 = vmatpush.msra.mxu0 %v343
        %v345 = vand.u32 %v268, 4294901760
        %v346 = vsub.f32 %v268, %v345
        %347 = vmatmul.f32.gmra.mxu0 %v346
        %v348 = vpop.f32.mrf.mxu0
        %v349 = vadd.f32 %v325, %v348
        %350 = vdwg.mxu0
        %351 = vmatpush.msra.mxu0 0.0
        %352 = vmatpush.msra.mxu0 0.0
        %353 = vmatpush.msra.mxu0 0.0
        %354 = vmatpush.msra.mxu0 0.0
        %355 = vmatpush.msra.mxu0 0.0
        %356 = vmatpush.msra.mxu0 0.0
        %357 = vmatpush.msra.mxu0 0.0
        %358 = vmatpush.msra.mxu0 0.0
        %359 = vmatpush.msra.mxu0 0.0
        %360 = vmatpush.msra.mxu0 0.0
        %361 = vmatpush.msra.mxu0 0.0
        %362 = vmatpush.msra.mxu0 0.0
        %363 = vmatpush.msra.mxu0 0.0
        %364 = vmatpush.msra.mxu0 0.0
        %365 = vmatpush.msra.mxu0 0.0
        %v366 = vand.u32 %v271, 4294901760
        %367 = vmatpush.msra.mxu0 %v366
        %v368 = vand.u32 %v268, 4294901760
        %v369 = vsub.f32 %v268, %v368
        %v370 = vand.u32 %v369, 4294901760
        %371 = vmatmul.f32.gmra.mxu0 %v370
        %v372 = vpop.f32.mrf.mxu0
        %v373 = vadd.f32 %v349, %v372
        %374 = vdwg.mxu0
        %375 = vmatpush.msra.mxu0 0.0
        %376 = vmatpush.msra.mxu0 0.0
        %377 = vmatpush.msra.mxu0 0.0
        %378 = vmatpush.msra.mxu0 0.0
        %379 = vmatpush.msra.mxu0 0.0
        %380 = vmatpush.msra.mxu0 0.0
        %381 = vmatpush.msra.mxu0 0.0
        %382 = vmatpush.msra.mxu0 0.0
        %383 = vmatpush.msra.mxu0 0.0
        %384 = vmatpush.msra.mxu0 0.0
        %385 = vmatpush.msra.mxu0 0.0
        %386 = vmatpush.msra.mxu0 0.0
        %387 = vmatpush.msra.mxu0 0.0
        %388 = vmatpush.msra.mxu0 0.0
        %389 = vmatpush.msra.mxu0 0.0
        %v390 = vand.u32 %v271, 4294901760
        %v391 = vsub.f32 %v271, %v390
        %v392 = vand.u32 %v391, 4294901760
        %393 = vmatpush.msra.mxu0 %v392
        %v394 = vand.u32 %v268, 4294901760
        %395 = vmatmul.f32.gmra.mxu0 %v394
        %v396 = vpop.f32.mrf.mxu0
        %v397 = vadd.f32 %v373, %v396
        %398 = vdwg.mxu0
        %399 = vmatpush.msra.mxu0 0.0
        %400 = vmatpush.msra.mxu0 0.0
        %401 = vmatpush.msra.mxu0 0.0
        %402 = vmatpush.msra.mxu0 0.0
        %403 = vmatpush.msra.mxu0 0.0
        %404 = vmatpush.msra.mxu0 0.0
        %405 = vmatpush.msra.mxu0 0.0
        %406 = vmatpush.msra.mxu0 0.0
        %407 = vmatpush.msra.mxu0 0.0
        %408 = vmatpush.msra.mxu0 0.0
        %409 = vmatpush.msra.mxu0 0.0
        %410 = vmatpush.msra.mxu0 0.0
        %411 = vmatpush.msra.mxu0 0.0
        %412 = vmatpush.msra.mxu0 0.0
        %413 = vmatpush.msra.mxu0 0.0
        %v414 = vand.u32 %v271, 4294901760
        %415 = vmatpush.msra.mxu0 %v414
        %v416 = vand.u32 %v268, 4294901760
        %417 = vmatmul.f32.gmra.mxu0 %v416
        %v418 = vpop.f32.mrf.mxu0
        %v419 = vadd.f32 %v397, %v418
        %420 = vdwg.mxu0
        %421 = vmatpush.msra.mxu0 0.0
        %422 = vmatpush.msra.mxu0 0.0
        %423 = vmatpush.msra.mxu0 0.0
        %424 = vmatpush.msra.mxu0 0.0
        %425 = vmatpush.msra.mxu0 0.0
        %426 = vmatpush.msra.mxu0 0.0
        %427 = vmatpush.msra.mxu0 0.0
        %428 = vmatpush.msra.mxu0 0.0
        %429 = vmatpush.msra.mxu0 0.0
        %430 = vmatpush.msra.mxu0 0.0
        %431 = vmatpush.msra.mxu0 0.0
        %432 = vmatpush.msra.mxu0 0.0
        %433 = vmatpush.msra.mxu0 0.0
        %434 = vmatpush.msra.mxu0 0.0
        %435 = vmatpush.msra.mxu0 0.0
        %v436 = vand.u32 %v273, 4294901760
        %437 = vmatpush.msra.mxu0 %v436
        %v438 = vand.u32 %v268, 4294901760
        %v439 = vsub.f32 %v268, %v438
        %v440 = vand.u32 %v439, 4294901760
        %v441 = vsub.f32 %v439, %v440
        %v442 = vand.u32 %v441, 4294901760
        %443 = vmatmul.f32.gmra.mxu0 %v442
        %v444 = vpop.f32.mrf.mxu0
        %v445 = vadd.f32 %v260, %v444
        %446 = vdwg.mxu0
        %447 = vmatpush.msra.mxu0 0.0
        %448 = vmatpush.msra.mxu0 0.0
        %449 = vmatpush.msra.mxu0 0.0
        %450 = vmatpush.msra.mxu0 0.0
        %451 = vmatpush.msra.mxu0 0.0
        %452 = vmatpush.msra.mxu0 0.0
        %453 = vmatpush.msra.mxu0 0.0
        %454 = vmatpush.msra.mxu0 0.0
        %455 = vmatpush.msra.mxu0 0.0
        %456 = vmatpush.msra.mxu0 0.0
        %457 = vmatpush.msra.mxu0 0.0
        %458 = vmatpush.msra.mxu0 0.0
        %459 = vmatpush.msra.mxu0 0.0
        %460 = vmatpush.msra.mxu0 0.0
        %461 = vmatpush.msra.mxu0 0.0
        %v462 = vand.u32 %v273, 4294901760
        %v463 = vsub.f32 %v273, %v462
        %v464 = vand.u32 %v463, 4294901760
        %v465 = vsub.f32 %v463, %v464
        %v466 = vand.u32 %v465, 4294901760
        %467 = vmatpush.msra.mxu0 %v466
        %v468 = vand.u32 %v268, 4294901760
        %469 = vmatmul.f32.gmra.mxu0 %v468
        %v470 = vpop.f32.mrf.mxu0
        %v471 = vadd.f32 %v445, %v470
        %472 = vdwg.mxu0
        %473 = vmatpush.msra.mxu0 0.0
        %474 = vmatpush.msra.mxu0 0.0
        %475 = vmatpush.msra.mxu0 0.0
        %476 = vmatpush.msra.mxu0 0.0
        %477 = vmatpush.msra.mxu0 0.0
        %478 = vmatpush.msra.mxu0 0.0
        %479 = vmatpush.msra.mxu0 0.0
        %480 = vmatpush.msra.mxu0 0.0
        %481 = vmatpush.msra.mxu0 0.0
        %482 = vmatpush.msra.mxu0 0.0
        %483 = vmatpush.msra.mxu0 0.0
        %484 = vmatpush.msra.mxu0 0.0
        %485 = vmatpush.msra.mxu0 0.0
        %486 = vmatpush.msra.mxu0 0.0
        %487 = vmatpush.msra.mxu0 0.0
        %v488 = vand.u32 %v273, 4294901760
        %v489 = vsub.f32 %v273, %v488
        %490 = vmatpush.msra.mxu0 %v489
        %v491 = vand.u32 %v268, 4294901760
        %v492 = vsub.f32 %v268, %v491
        %493 = vmatmul.f32.gmra.mxu0 %v492
        %v494 = vpop.f32.mrf.mxu0
        %v495 = vadd.f32 %v471, %v494
        %496 = vdwg.mxu0
        %497 = vmatpush.msra.mxu0 0.0
        %498 = vmatpush.msra.mxu0 0.0
        %499 = vmatpush.msra.mxu0 0.0
        %500 = vmatpush.msra.mxu0 0.0
        %501 = vmatpush.msra.mxu0 0.0
        %502 = vmatpush.msra.mxu0 0.0
        %503 = vmatpush.msra.mxu0 0.0
        %504 = vmatpush.msra.mxu0 0.0
        %505 = vmatpush.msra.mxu0 0.0
        %506 = vmatpush.msra.mxu0 0.0
        %507 = vmatpush.msra.mxu0 0.0
        %508 = vmatpush.msra.mxu0 0.0
        %509 = vmatpush.msra.mxu0 0.0
        %510 = vmatpush.msra.mxu0 0.0
        %511 = vmatpush.msra.mxu0 0.0
        %v512 = vand.u32 %v273, 4294901760
        %513 = vmatpush.msra.mxu0 %v512
        %v514 = vand.u32 %v268, 4294901760
        %v515 = vsub.f32 %v268, %v514
        %v516 = vand.u32 %v515, 4294901760
        %517 = vmatmul.f32.gmra.mxu0 %v516
        %v518 = vpop.f32.mrf.mxu0
        %v519 = vadd.f32 %v495, %v518
        %520 = vdwg.mxu0
        %521 = vmatpush.msra.mxu0 0.0
        %522 = vmatpush.msra.mxu0 0.0
        %523 = vmatpush.msra.mxu0 0.0
        %524 = vmatpush.msra.mxu0 0.0
        %525 = vmatpush.msra.mxu0 0.0
        %526 = vmatpush.msra.mxu0 0.0
        %527 = vmatpush.msra.mxu0 0.0
        %528 = vmatpush.msra.mxu0 0.0
        %529 = vmatpush.msra.mxu0 0.0
        %530 = vmatpush.msra.mxu0 0.0
        %531 = vmatpush.msra.mxu0 0.0
        %532 = vmatpush.msra.mxu0 0.0
        %533 = vmatpush.msra.mxu0 0.0
        %534 = vmatpush.msra.mxu0 0.0
        %535 = vmatpush.msra.mxu0 0.0
        %v536 = vand.u32 %v273, 4294901760
        %v537 = vsub.f32 %v273, %v536
        %v538 = vand.u32 %v537, 4294901760
        %539 = vmatpush.msra.mxu0 %v538
        %v540 = vand.u32 %v268, 4294901760
        %541 = vmatmul.f32.gmra.mxu0 %v540
        %v542 = vpop.f32.mrf.mxu0
        %v543 = vadd.f32 %v519, %v542
        %544 = vdwg.mxu0
        %545 = vmatpush.msra.mxu0 0.0
        %546 = vmatpush.msra.mxu0 0.0
        %547 = vmatpush.msra.mxu0 0.0
        %548 = vmatpush.msra.mxu0 0.0
        %549 = vmatpush.msra.mxu0 0.0
        %550 = vmatpush.msra.mxu0 0.0
        %551 = vmatpush.msra.mxu0 0.0
        %552 = vmatpush.msra.mxu0 0.0
        %553 = vmatpush.msra.mxu0 0.0
        %554 = vmatpush.msra.mxu0 0.0
        %555 = vmatpush.msra.mxu0 0.0
        %556 = vmatpush.msra.mxu0 0.0
        %557 = vmatpush.msra.mxu0 0.0
        %558 = vmatpush.msra.mxu0 0.0
        %559 = vmatpush.msra.mxu0 0.0
        %v560 = vand.u32 %v273, 4294901760
        %561 = vmatpush.msra.mxu0 %v560
        %v562 = vand.u32 %v268, 4294901760
        %563 = vmatmul.f32.gmra.mxu0 %v562
        %v564 = vpop.f32.mrf.mxu0
        %v565 = vadd.f32 %v543, %v564
        %566 = vdwg.mxu0
        %v567 = vmax.f32 %v419, 0.0
        %v568 = vmax.f32 %v565, 0.0
        %v569 = vld [vmem:[%s3] sm:$0xff]
        %v570 = vld [vmem:[%s3 + $0x8] sm:$0xff]
        %v571 = vld [vmem:[%s3 + $0x10] sm:$0xff]
        %v572 = vld [vmem:[%s3 + $0x18] sm:$0xff]
        %v573 = vld [vmem:[%s4] sm:$0xff]
        %v574 = vld [vmem:[%s4 + $0x8] sm:$0xff]
        %v575 = vld [vmem:[%s4 + $0x10] sm:$0xff]
        %v576 = vld [vmem:[%s4 + $0x18] sm:$0xff]
        %578 = vset.pattern.permute.xlu0 0
        %579 = vperm.xlu0 %578, %v573
        %v580 = vpop.permute.xlu0 %579
        %583 = vset.pattern.permute.xlu0 0
        %584 = vperm.xlu0 %583, %v574
        %v585 = vpop.permute.xlu0 %584
        %588 = vset.pattern.permute.xlu0 0
        %589 = vperm.xlu0 %588, %v575
        %v590 = vpop.permute.xlu0 %589
        %593 = vset.pattern.permute.xlu0 0
        %594 = vperm.xlu0 %593, %v576
        %v595 = vpop.permute.xlu0 %594
        %v598 = vsel %vm266, %v569, 0
        %v601 = vsel %vm266, %v570, 0
        %v604 = vsel %vm266, %v571, 0
        %v607 = vsel %vm266, %v572, 0
        %v610 = vsel %vm270, %v567, 0
        %v613 = vsel %vm270, %v568, 0
        %615 = vmatpush.msra.mxu0 0.0
        %616 = vmatpush.msra.mxu0 0.0
        %617 = vmatpush.msra.mxu0 0.0
        %618 = vmatpush.msra.mxu0 0.0
        %619 = vmatpush.msra.mxu0 0.0
        %620 = vmatpush.msra.mxu0 0.0
        %621 = vmatpush.msra.mxu0 0.0
        %622 = vmatpush.msra.mxu0 0.0
        %623 = vmatpush.msra.mxu0 0.0
        %624 = vmatpush.msra.mxu0 0.0
        %625 = vmatpush.msra.mxu0 0.0
        %626 = vmatpush.msra.mxu0 0.0
        %627 = vmatpush.msra.mxu0 0.0
        %628 = vmatpush.msra.mxu0 0.0
        %629 = vmatpush.msra.mxu0 0.0
        %v630 = vand.u32 %v610, 4294901760
        %631 = vmatpush.msra.mxu0 %v630
        %v632 = vand.u32 %v598, 4294901760
        %v633 = vsub.f32 %v598, %v632
        %v634 = vand.u32 %v633, 4294901760
        %v635 = vsub.f32 %v633, %v634
        %v636 = vand.u32 %v635, 4294901760
        %637 = vmatmul.f32.gmra.mxu0 %v636
        %v638 = vpop.f32.mrf.mxu0
        %v639 = vadd.f32 %v580, %v638
        %v640 = vand.u32 %v601, 4294901760
        %v641 = vsub.f32 %v601, %v640
        %v642 = vand.u32 %v641, 4294901760
        %v643 = vsub.f32 %v641, %v642
        %v644 = vand.u32 %v643, 4294901760
        %645 = vmatmul.f32.gmra.mxu0 %v644
        %v646 = vpop.f32.mrf.mxu0
        %v647 = vadd.f32 %v585, %v646
        %v648 = vand.u32 %v604, 4294901760
        %v649 = vsub.f32 %v604, %v648
        %v650 = vand.u32 %v649, 4294901760
        %v651 = vsub.f32 %v649, %v650
        %v652 = vand.u32 %v651, 4294901760
        %653 = vmatmul.f32.gmra.mxu0 %v652
        %v654 = vpop.f32.mrf.mxu0
        %v655 = vadd.f32 %v590, %v654
        %v656 = vand.u32 %v607, 4294901760
        %v657 = vsub.f32 %v607, %v656
        %v658 = vand.u32 %v657, 4294901760
        %v659 = vsub.f32 %v657, %v658
        %v660 = vand.u32 %v659, 4294901760
        %661 = vmatmul.f32.gmra.mxu0 %v660
        %v662 = vpop.f32.mrf.mxu0
        %v663 = vadd.f32 %v595, %v662
        %664 = vdwg.mxu0
        %665 = vmatpush.msra.mxu0 0.0
        %666 = vmatpush.msra.mxu0 0.0
        %667 = vmatpush.msra.mxu0 0.0
        %668 = vmatpush.msra.mxu0 0.0
        %669 = vmatpush.msra.mxu0 0.0
        %670 = vmatpush.msra.mxu0 0.0
        %671 = vmatpush.msra.mxu0 0.0
        %672 = vmatpush.msra.mxu0 0.0
        %673 = vmatpush.msra.mxu0 0.0
        %674 = vmatpush.msra.mxu0 0.0
        %675 = vmatpush.msra.mxu0 0.0
        %676 = vmatpush.msra.mxu0 0.0
        %677 = vmatpush.msra.mxu0 0.0
        %678 = vmatpush.msra.mxu0 0.0
        %679 = vmatpush.msra.mxu0 0.0
        %v680 = vand.u32 %v610, 4294901760
        %v681 = vsub.f32 %v610, %v680
        %v682 = vand.u32 %v681, 4294901760
        %v683 = vsub.f32 %v681, %v682
        %v684 = vand.u32 %v683, 4294901760
        %685 = vmatpush.msra.mxu0 %v684
        %v686 = vand.u32 %v598, 4294901760
        %687 = vmatmul.f32.gmra.mxu0 %v686
        %v688 = vpop.f32.mrf.mxu0
        %v689 = vadd.f32 %v639, %v688
        %v690 = vand.u32 %v601, 4294901760
        %691 = vmatmul.f32.gmra.mxu0 %v690
        %v692 = vpop.f32.mrf.mxu0
        %v693 = vadd.f32 %v647, %v692
        %v694 = vand.u32 %v604, 4294901760
        %695 = vmatmul.f32.gmra.mxu0 %v694
        %v696 = vpop.f32.mrf.mxu0
        %v697 = vadd.f32 %v655, %v696
        %v698 = vand.u32 %v607, 4294901760
        %699 = vmatmul.f32.gmra.mxu0 %v698
        %v700 = vpop.f32.mrf.mxu0
        %v701 = vadd.f32 %v663, %v700
        %702 = vdwg.mxu0
        %703 = vmatpush.msra.mxu0 0.0
        %704 = vmatpush.msra.mxu0 0.0
        %705 = vmatpush.msra.mxu0 0.0
        %706 = vmatpush.msra.mxu0 0.0
        %707 = vmatpush.msra.mxu0 0.0
        %708 = vmatpush.msra.mxu0 0.0
        %709 = vmatpush.msra.mxu0 0.0
        %710 = vmatpush.msra.mxu0 0.0
        %711 = vmatpush.msra.mxu0 0.0
        %712 = vmatpush.msra.mxu0 0.0
        %713 = vmatpush.msra.mxu0 0.0
        %714 = vmatpush.msra.mxu0 0.0
        %715 = vmatpush.msra.mxu0 0.0
        %716 = vmatpush.msra.mxu0 0.0
        %717 = vmatpush.msra.mxu0 0.0
        %v718 = vand.u32 %v610, 4294901760
        %v719 = vsub.f32 %v610, %v718
        %720 = vmatpush.msra.mxu0 %v719
        %v721 = vand.u32 %v598, 4294901760
        %v722 = vsub.f32 %v598, %v721
        %723 = vmatmul.f32.gmra.mxu0 %v722
        %v724 = vpop.f32.mrf.mxu0
        %v725 = vadd.f32 %v689, %v724
        %v726 = vand.u32 %v601, 4294901760
        %v727 = vsub.f32 %v601, %v726
        %728 = vmatmul.f32.gmra.mxu0 %v727
        %v729 = vpop.f32.mrf.mxu0
        %v730 = vadd.f32 %v693, %v729
        %v731 = vand.u32 %v604, 4294901760
        %v732 = vsub.f32 %v604, %v731
        %733 = vmatmul.f32.gmra.mxu0 %v732
        %v734 = vpop.f32.mrf.mxu0
        %v735 = vadd.f32 %v697, %v734
        %v736 = vand.u32 %v607, 4294901760
        %v737 = vsub.f32 %v607, %v736
        %738 = vmatmul.f32.gmra.mxu0 %v737
        %v739 = vpop.f32.mrf.mxu0
        %v740 = vadd.f32 %v701, %v739
        %741 = vdwg.mxu0
        %742 = vmatpush.msra.mxu0 0.0
        %743 = vmatpush.msra.mxu0 0.0
        %744 = vmatpush.msra.mxu0 0.0
        %745 = vmatpush.msra.mxu0 0.0
        %746 = vmatpush.msra.mxu0 0.0
        %747 = vmatpush.msra.mxu0 0.0
        %748 = vmatpush.msra.mxu0 0.0
        %749 = vmatpush.msra.mxu0 0.0
        %750 = vmatpush.msra.mxu0 0.0
        %751 = vmatpush.msra.mxu0 0.0
        %752 = vmatpush.msra.mxu0 0.0
        %753 = vmatpush.msra.mxu0 0.0
        %754 = vmatpush.msra.mxu0 0.0
        %755 = vmatpush.msra.mxu0 0.0
        %756 = vmatpush.msra.mxu0 0.0
        %v757 = vand.u32 %v610, 4294901760
        %758 = vmatpush.msra.mxu0 %v757
        %v759 = vand.u32 %v598, 4294901760
        %v760 = vsub.f32 %v598, %v759
        %v761 = vand.u32 %v760, 4294901760
        %762 = vmatmul.f32.gmra.mxu0 %v761
        %v763 = vpop.f32.mrf.mxu0
        %v764 = vadd.f32 %v725, %v763
        %v765 = vand.u32 %v601, 4294901760
        %v766 = vsub.f32 %v601, %v765
        %v767 = vand.u32 %v766, 4294901760
        %768 = vmatmul.f32.gmra.mxu0 %v767
        %v769 = vpop.f32.mrf.mxu0
        %v770 = vadd.f32 %v730, %v769
        %v771 = vand.u32 %v604, 4294901760
        %v772 = vsub.f32 %v604, %v771
        %v773 = vand.u32 %v772, 4294901760
        %774 = vmatmul.f32.gmra.mxu0 %v773
        %v775 = vpop.f32.mrf.mxu0
        %v776 = vadd.f32 %v735, %v775
        %v777 = vand.u32 %v607, 4294901760
        %v778 = vsub.f32 %v607, %v777
        %v779 = vand.u32 %v778, 4294901760
        %780 = vmatmul.f32.gmra.mxu0 %v779
        %v781 = vpop.f32.mrf.mxu0
        %v782 = vadd.f32 %v740, %v781
        %783 = vdwg.mxu0
        %784 = vmatpush.msra.mxu0 0.0
        %785 = vmatpush.msra.mxu0 0.0
        %786 = vmatpush.msra.mxu0 0.0
        %787 = vmatpush.msra.mxu0 0.0
        %788 = vmatpush.msra.mxu0 0.0
        %789 = vmatpush.msra.mxu0 0.0
        %790 = vmatpush.msra.mxu0 0.0
        %791 = vmatpush.msra.mxu0 0.0
        %792 = vmatpush.msra.mxu0 0.0
        %793 = vmatpush.msra.mxu0 0.0
        %794 = vmatpush.msra.mxu0 0.0
        %795 = vmatpush.msra.mxu0 0.0
        %796 = vmatpush.msra.mxu0 0.0
        %797 = vmatpush.msra.mxu0 0.0
        %798 = vmatpush.msra.mxu0 0.0
        %v799 = vand.u32 %v610, 4294901760
        %v800 = vsub.f32 %v610, %v799
        %v801 = vand.u32 %v800, 4294901760
        %802 = vmatpush.msra.mxu0 %v801
        %v803 = vand.u32 %v598, 4294901760
        %804 = vmatmul.f32.gmra.mxu0 %v803
        %v805 = vpop.f32.mrf.mxu0
        %v806 = vadd.f32 %v764, %v805
        %v807 = vand.u32 %v601, 4294901760
        %808 = vmatmul.f32.gmra.mxu0 %v807
        %v809 = vpop.f32.mrf.mxu0
        %v810 = vadd.f32 %v770, %v809
        %v811 = vand.u32 %v604, 4294901760
        %812 = vmatmul.f32.gmra.mxu0 %v811
        %v813 = vpop.f32.mrf.mxu0
        %v814 = vadd.f32 %v776, %v813
        %v815 = vand.u32 %v607, 4294901760
        %816 = vmatmul.f32.gmra.mxu0 %v815
        %v817 = vpop.f32.mrf.mxu0
        %v818 = vadd.f32 %v782, %v817
        %819 = vdwg.mxu0
        %820 = vmatpush.msra.mxu0 0.0
        %821 = vmatpush.msra.mxu0 0.0
        %822 = vmatpush.msra.mxu0 0.0
        %823 = vmatpush.msra.mxu0 0.0
        %824 = vmatpush.msra.mxu0 0.0
        %825 = vmatpush.msra.mxu0 0.0
        %826 = vmatpush.msra.mxu0 0.0
        %827 = vmatpush.msra.mxu0 0.0
        %828 = vmatpush.msra.mxu0 0.0
        %829 = vmatpush.msra.mxu0 0.0
        %830 = vmatpush.msra.mxu0 0.0
        %831 = vmatpush.msra.mxu0 0.0
        %832 = vmatpush.msra.mxu0 0.0
        %833 = vmatpush.msra.mxu0 0.0
        %834 = vmatpush.msra.mxu0 0.0
        %v835 = vand.u32 %v610, 4294901760
        %836 = vmatpush.msra.mxu0 %v835
        %v837 = vand.u32 %v598, 4294901760
        %838 = vmatmul.f32.gmra.mxu0 %v837
        %v839 = vpop.f32.mrf.mxu0
        %v840 = vadd.f32 %v806, %v839
        %v841 = vand.u32 %v601, 4294901760
        %842 = vmatmul.f32.gmra.mxu0 %v841
        %v843 = vpop.f32.mrf.mxu0
        %v844 = vadd.f32 %v810, %v843
        %v845 = vand.u32 %v604, 4294901760
        %846 = vmatmul.f32.gmra.mxu0 %v845
        %v847 = vpop.f32.mrf.mxu0
        %v848 = vadd.f32 %v814, %v847
        %v849 = vand.u32 %v607, 4294901760
        %850 = vmatmul.f32.gmra.mxu0 %v849
        %v851 = vpop.f32.mrf.mxu0
        %v852 = vadd.f32 %v818, %v851
        %853 = vdwg.mxu0
        %854 = vmatpush.msra.mxu0 0.0
        %855 = vmatpush.msra.mxu0 0.0
        %856 = vmatpush.msra.mxu0 0.0
        %857 = vmatpush.msra.mxu0 0.0
        %858 = vmatpush.msra.mxu0 0.0
        %859 = vmatpush.msra.mxu0 0.0
        %860 = vmatpush.msra.mxu0 0.0
        %861 = vmatpush.msra.mxu0 0.0
        %862 = vmatpush.msra.mxu0 0.0
        %863 = vmatpush.msra.mxu0 0.0
        %864 = vmatpush.msra.mxu0 0.0
        %865 = vmatpush.msra.mxu0 0.0
        %866 = vmatpush.msra.mxu0 0.0
        %867 = vmatpush.msra.mxu0 0.0
        %868 = vmatpush.msra.mxu0 0.0
        %v869 = vand.u32 %v613, 4294901760
        %870 = vmatpush.msra.mxu0 %v869
        %v871 = vand.u32 %v598, 4294901760
        %v872 = vsub.f32 %v598, %v871
        %v873 = vand.u32 %v872, 4294901760
        %v874 = vsub.f32 %v872, %v873
        %v875 = vand.u32 %v874, 4294901760
        %876 = vmatmul.f32.gmra.mxu0 %v875
        %v877 = vpop.f32.mrf.mxu0
        %v878 = vadd.f32 %v580, %v877
        %v879 = vand.u32 %v601, 4294901760
        %v880 = vsub.f32 %v601, %v879
        %v881 = vand.u32 %v880, 4294901760
        %v882 = vsub.f32 %v880, %v881
        %v883 = vand.u32 %v882, 4294901760
        %884 = vmatmul.f32.gmra.mxu0 %v883
        %v885 = vpop.f32.mrf.mxu0
        %v886 = vadd.f32 %v585, %v885
        %v887 = vand.u32 %v604, 4294901760
        %v888 = vsub.f32 %v604, %v887
        %v889 = vand.u32 %v888, 4294901760
        %v890 = vsub.f32 %v888, %v889
        %v891 = vand.u32 %v890, 4294901760
        %892 = vmatmul.f32.gmra.mxu0 %v891
        %v893 = vpop.f32.mrf.mxu0
        %v894 = vadd.f32 %v590, %v893
        %v895 = vand.u32 %v607, 4294901760
        %v896 = vsub.f32 %v607, %v895
        %v897 = vand.u32 %v896, 4294901760
        %v898 = vsub.f32 %v896, %v897
        %v899 = vand.u32 %v898, 4294901760
        %900 = vmatmul.f32.gmra.mxu0 %v899
        %v901 = vpop.f32.mrf.mxu0
        %v902 = vadd.f32 %v595, %v901
        %903 = vdwg.mxu0
        %904 = vmatpush.msra.mxu0 0.0
        %905 = vmatpush.msra.mxu0 0.0
        %906 = vmatpush.msra.mxu0 0.0
        %907 = vmatpush.msra.mxu0 0.0
        %908 = vmatpush.msra.mxu0 0.0
        %909 = vmatpush.msra.mxu0 0.0
        %910 = vmatpush.msra.mxu0 0.0
        %911 = vmatpush.msra.mxu0 0.0
        %912 = vmatpush.msra.mxu0 0.0
        %913 = vmatpush.msra.mxu0 0.0
        %914 = vmatpush.msra.mxu0 0.0
        %915 = vmatpush.msra.mxu0 0.0
        %916 = vmatpush.msra.mxu0 0.0
        %917 = vmatpush.msra.mxu0 0.0
        %918 = vmatpush.msra.mxu0 0.0
        %v919 = vand.u32 %v613, 4294901760
        %v920 = vsub.f32 %v613, %v919
        %v921 = vand.u32 %v920, 4294901760
        %v922 = vsub.f32 %v920, %v921
        %v923 = vand.u32 %v922, 4294901760
        %924 = vmatpush.msra.mxu0 %v923
        %v925 = vand.u32 %v598, 4294901760
        %926 = vmatmul.f32.gmra.mxu0 %v925
        %v927 = vpop.f32.mrf.mxu0
        %v928 = vadd.f32 %v878, %v927
        %v929 = vand.u32 %v601, 4294901760
        %930 = vmatmul.f32.gmra.mxu0 %v929
        %v931 = vpop.f32.mrf.mxu0
        %v932 = vadd.f32 %v886, %v931
        %v933 = vand.u32 %v604, 4294901760
        %934 = vmatmul.f32.gmra.mxu0 %v933
        %v935 = vpop.f32.mrf.mxu0
        %v936 = vadd.f32 %v894, %v935
        %v937 = vand.u32 %v607, 4294901760
        %938 = vmatmul.f32.gmra.mxu0 %v937
        %v939 = vpop.f32.mrf.mxu0
        %v940 = vadd.f32 %v902, %v939
        %941 = vdwg.mxu0
        %942 = vmatpush.msra.mxu0 0.0
        %943 = vmatpush.msra.mxu0 0.0
        %944 = vmatpush.msra.mxu0 0.0
        %945 = vmatpush.msra.mxu0 0.0
        %946 = vmatpush.msra.mxu0 0.0
        %947 = vmatpush.msra.mxu0 0.0
        %948 = vmatpush.msra.mxu0 0.0
        %949 = vmatpush.msra.mxu0 0.0
        %950 = vmatpush.msra.mxu0 0.0
        %951 = vmatpush.msra.mxu0 0.0
        %952 = vmatpush.msra.mxu0 0.0
        %953 = vmatpush.msra.mxu0 0.0
        %954 = vmatpush.msra.mxu0 0.0
        %955 = vmatpush.msra.mxu0 0.0
        %956 = vmatpush.msra.mxu0 0.0
        %v957 = vand.u32 %v613, 4294901760
        %v958 = vsub.f32 %v613, %v957
        %959 = vmatpush.msra.mxu0 %v958
        %v960 = vand.u32 %v598, 4294901760
        %v961 = vsub.f32 %v598, %v960
        %962 = vmatmul.f32.gmra.mxu0 %v961
        %v963 = vpop.f32.mrf.mxu0
        %v964 = vadd.f32 %v928, %v963
        %v965 = vand.u32 %v601, 4294901760
        %v966 = vsub.f32 %v601, %v965
        %967 = vmatmul.f32.gmra.mxu0 %v966
        %v968 = vpop.f32.mrf.mxu0
        %v969 = vadd.f32 %v932, %v968
        %v970 = vand.u32 %v604, 4294901760
        %v971 = vsub.f32 %v604, %v970
        %972 = vmatmul.f32.gmra.mxu0 %v971
        %v973 = vpop.f32.mrf.mxu0
        %v974 = vadd.f32 %v936, %v973
        %v975 = vand.u32 %v607, 4294901760
        %v976 = vsub.f32 %v607, %v975
        %977 = vmatmul.f32.gmra.mxu0 %v976
        %v978 = vpop.f32.mrf.mxu0
        %v979 = vadd.f32 %v940, %v978
        %980 = vdwg.mxu0
        %981 = vmatpush.msra.mxu0 0.0
        %982 = vmatpush.msra.mxu0 0.0
        %983 = vmatpush.msra.mxu0 0.0
        %984 = vmatpush.msra.mxu0 0.0
        %985 = vmatpush.msra.mxu0 0.0
        %986 = vmatpush.msra.mxu0 0.0
        %987 = vmatpush.msra.mxu0 0.0
        %988 = vmatpush.msra.mxu0 0.0
        %989 = vmatpush.msra.mxu0 0.0
        %990 = vmatpush.msra.mxu0 0.0
        %991 = vmatpush.msra.mxu0 0.0
        %992 = vmatpush.msra.mxu0 0.0
        %993 = vmatpush.msra.mxu0 0.0
        %994 = vmatpush.msra.mxu0 0.0
        %995 = vmatpush.msra.mxu0 0.0
        %v996 = vand.u32 %v613, 4294901760
        %997 = vmatpush.msra.mxu0 %v996
        %v998 = vand.u32 %v598, 4294901760
        %v999 = vsub.f32 %v598, %v998
        %v1000 = vand.u32 %v999, 4294901760
        %1001 = vmatmul.f32.gmra.mxu0 %v1000
        %v1002 = vpop.f32.mrf.mxu0
        %v1003 = vadd.f32 %v964, %v1002
        %v1004 = vand.u32 %v601, 4294901760
        %v1005 = vsub.f32 %v601, %v1004
        %v1006 = vand.u32 %v1005, 4294901760
        %1007 = vmatmul.f32.gmra.mxu0 %v1006
        %v1008 = vpop.f32.mrf.mxu0
        %v1009 = vadd.f32 %v969, %v1008
        %v1010 = vand.u32 %v604, 4294901760
        %v1011 = vsub.f32 %v604, %v1010
        %v1012 = vand.u32 %v1011, 4294901760
        %1013 = vmatmul.f32.gmra.mxu0 %v1012
        %v1014 = vpop.f32.mrf.mxu0
        %v1015 = vadd.f32 %v974, %v1014
        %v1016 = vand.u32 %v607, 4294901760
        %v1017 = vsub.f32 %v607, %v1016
        %v1018 = vand.u32 %v1017, 4294901760
        %1019 = vmatmul.f32.gmra.mxu0 %v1018
        %v1020 = vpop.f32.mrf.mxu0
        %v1021 = vadd.f32 %v979, %v1020
        %1022 = vdwg.mxu0
        %1023 = vmatpush.msra.mxu0 0.0
        %1024 = vmatpush.msra.mxu0 0.0
        %1025 = vmatpush.msra.mxu0 0.0
        %1026 = vmatpush.msra.mxu0 0.0
        %1027 = vmatpush.msra.mxu0 0.0
        %1028 = vmatpush.msra.mxu0 0.0
        %1029 = vmatpush.msra.mxu0 0.0
        %1030 = vmatpush.msra.mxu0 0.0
        %1031 = vmatpush.msra.mxu0 0.0
        %1032 = vmatpush.msra.mxu0 0.0
        %1033 = vmatpush.msra.mxu0 0.0
        %1034 = vmatpush.msra.mxu0 0.0
        %1035 = vmatpush.msra.mxu0 0.0
        %1036 = vmatpush.msra.mxu0 0.0
        %1037 = vmatpush.msra.mxu0 0.0
        %v1038 = vand.u32 %v613, 4294901760
        %v1039 = vsub.f32 %v613, %v1038
        %v1040 = vand.u32 %v1039, 4294901760
        %1041 = vmatpush.msra.mxu0 %v1040
        %v1042 = vand.u32 %v598, 4294901760
        %1043 = vmatmul.f32.gmra.mxu0 %v1042
        %v1044 = vpop.f32.mrf.mxu0
        %v1045 = vadd.f32 %v1003, %v1044
        %v1046 = vand.u32 %v601, 4294901760
        %1047 = vmatmul.f32.gmra.mxu0 %v1046
        %v1048 = vpop.f32.mrf.mxu0
        %v1049 = vadd.f32 %v1009, %v1048
        %v1050 = vand.u32 %v604, 4294901760
        %1051 = vmatmul.f32.gmra.mxu0 %v1050
        %v1052 = vpop.f32.mrf.mxu0
        %v1053 = vadd.f32 %v1015, %v1052
        %v1054 = vand.u32 %v607, 4294901760
        %1055 = vmatmul.f32.gmra.mxu0 %v1054
        %v1056 = vpop.f32.mrf.mxu0
        %v1057 = vadd.f32 %v1021, %v1056
        %1058 = vdwg.mxu0
        %1059 = vmatpush.msra.mxu0 0.0
        %1060 = vmatpush.msra.mxu0 0.0
        %1061 = vmatpush.msra.mxu0 0.0
        %1062 = vmatpush.msra.mxu0 0.0
        %1063 = vmatpush.msra.mxu0 0.0
        %1064 = vmatpush.msra.mxu0 0.0
        %1065 = vmatpush.msra.mxu0 0.0
        %1066 = vmatpush.msra.mxu0 0.0
        %1067 = vmatpush.msra.mxu0 0.0
        %1068 = vmatpush.msra.mxu0 0.0
        %1069 = vmatpush.msra.mxu0 0.0
        %1070 = vmatpush.msra.mxu0 0.0
        %1071 = vmatpush.msra.mxu0 0.0
        %1072 = vmatpush.msra.mxu0 0.0
        %1073 = vmatpush.msra.mxu0 0.0
        %v1074 = vand.u32 %v613, 4294901760
        %1075 = vmatpush.msra.mxu0 %v1074
        %v1076 = vand.u32 %v598, 4294901760
        %1077 = vmatmul.f32.gmra.mxu0 %v1076
        %v1078 = vpop.f32.mrf.mxu0
        %v1079 = vadd.f32 %v1045, %v1078
        %v1080 = vand.u32 %v601, 4294901760
        %1081 = vmatmul.f32.gmra.mxu0 %v1080
        %v1082 = vpop.f32.mrf.mxu0
        %v1083 = vadd.f32 %v1049, %v1082
        %v1084 = vand.u32 %v604, 4294901760
        %1085 = vmatmul.f32.gmra.mxu0 %v1084
        %v1086 = vpop.f32.mrf.mxu0
        %v1087 = vadd.f32 %v1053, %v1086
        %v1088 = vand.u32 %v607, 4294901760
        %1089 = vmatmul.f32.gmra.mxu0 %v1088
        %v1090 = vpop.f32.mrf.mxu0
        %v1091 = vadd.f32 %v1057, %v1090
        %1092 = vdwg.mxu0
        %v1093 = vlaneseq
        %v1094 = vshrl.u32 %v1093, 7
        %v1095 = vadd.s32 %v1094, 8
        %v1096 = vadd.s32 %v1094, 16
        %v1097 = vadd.s32 %v1094, 24
        %v1098 = vadd.s32 %v1094, 32
        %v1099 = vadd.s32 %v1094, 40
        %v1100 = vadd.s32 %v1094, 48
        %v1101 = vadd.s32 %v1094, 56
        %v1102 = vadd.s32 %v1094, 64
        %v1103 = vadd.s32 %v1094, 72
        %v1104 = vadd.s32 %v1094, 80
        %v1105 = vadd.s32 %v1094, 88
        %v1106 = vadd.s32 %v1094, 96
        %v1107 = vadd.s32 %v1094, 104
        %v1108 = vadd.s32 %v1094, 112
        %v1109 = vadd.s32 %v1094, 120
        %v1110 = vadd.s32 %v1094, 128
        %v1111 = vadd.s32 %v1094, 136
        %v1112 = vadd.s32 %v1094, 144
        %v1113 = vadd.s32 %v1094, 152
        %v1114 = vadd.s32 %v1094, 160
        %v1115 = vadd.s32 %v1094, 168
        %v1116 = vadd.s32 %v1094, 176
        %v1117 = vadd.s32 %v1094, 184
        %v1118 = vadd.s32 %v1094, 192
        %v1119 = vadd.s32 %v1094, 200
        %v1120 = vadd.s32 %v1094, 208
        %v1121 = vadd.s32 %v1094, 216
        %v1122 = vadd.s32 %v1094, 224
        %v1123 = vadd.s32 %v1094, 232
        %v1124 = vadd.s32 %v1094, 240
        %v1125 = vadd.s32 %v1094, 248
        %v1126 = vlaneseq
        %v1127 = vand.u32 %v1126, 127
        %v1128 = vmul.u32 %v1127, 16
        %vm1129 = vcmp.ge.s32.totalorder %v1094, %v1128
        %vm1130 = vcmp.ge.s32.totalorder %v1095, %v1128
        %vm1131 = vcmp.ge.s32.totalorder %v1096, %v1128
        %vm1132 = vcmp.ge.s32.totalorder %v1097, %v1128
        %vm1133 = vcmp.ge.s32.totalorder %v1098, %v1128
        %vm1134 = vcmp.ge.s32.totalorder %v1099, %v1128
        %vm1135 = vcmp.ge.s32.totalorder %v1100, %v1128
        %vm1136 = vcmp.ge.s32.totalorder %v1101, %v1128
        %vm1137 = vcmp.ge.s32.totalorder %v1102, %v1128
        %vm1138 = vcmp.ge.s32.totalorder %v1103, %v1128
        %vm1139 = vcmp.ge.s32.totalorder %v1104, %v1128
        %vm1140 = vcmp.ge.s32.totalorder %v1105, %v1128
        %vm1141 = vcmp.ge.s32.totalorder %v1106, %v1128
        %vm1142 = vcmp.ge.s32.totalorder %v1107, %v1128
        %vm1143 = vcmp.ge.s32.totalorder %v1108, %v1128
        %vm1144 = vcmp.ge.s32.totalorder %v1109, %v1128
        %vm1145 = vcmp.ge.s32.totalorder %v1110, %v1128
        %vm1146 = vcmp.ge.s32.totalorder %v1111, %v1128
        %vm1147 = vcmp.ge.s32.totalorder %v1112, %v1128
        %vm1148 = vcmp.ge.s32.totalorder %v1113, %v1128
        %vm1149 = vcmp.ge.s32.totalorder %v1114, %v1128
        %vm1150 = vcmp.ge.s32.totalorder %v1115, %v1128
        %vm1151 = vcmp.ge.s32.totalorder %v1116, %v1128
        %vm1152 = vcmp.ge.s32.totalorder %v1117, %v1128
        %vm1153 = vcmp.ge.s32.totalorder %v1118, %v1128
        %vm1154 = vcmp.ge.s32.totalorder %v1119, %v1128
        %vm1155 = vcmp.ge.s32.totalorder %v1120, %v1128
        %vm1156 = vcmp.ge.s32.totalorder %v1121, %v1128
        %vm1157 = vcmp.ge.s32.totalorder %v1122, %v1128
        %vm1158 = vcmp.ge.s32.totalorder %v1123, %v1128
        %vm1159 = vcmp.ge.s32.totalorder %v1124, %v1128
        %vm1160 = vcmp.ge.s32.totalorder %v1125, %v1128
        %v1161 = vadd.s32 %v1128, 16
        %vm1162 = vcmp.lt.s32.totalorder %v1094, %v1161
        %vm1163 = vcmp.lt.s32.totalorder %v1095, %v1161
        %vm1164 = vcmp.lt.s32.totalorder %v1096, %v1161
        %vm1165 = vcmp.lt.s32.totalorder %v1097, %v1161
        %vm1166 = vcmp.lt.s32.totalorder %v1098, %v1161
        %vm1167 = vcmp.lt.s32.totalorder %v1099, %v1161
        %vm1168 = vcmp.lt.s32.totalorder %v1100, %v1161
        %vm1169 = vcmp.lt.s32.totalorder %v1101, %v1161
        %vm1170 = vcmp.lt.s32.totalorder %v1102, %v1161
        %vm1171 = vcmp.lt.s32.totalorder %v1103, %v1161
        %vm1172 = vcmp.lt.s32.totalorder %v1104, %v1161
        %vm1173 = vcmp.lt.s32.totalorder %v1105, %v1161
        %vm1174 = vcmp.lt.s32.totalorder %v1106, %v1161
        %vm1175 = vcmp.lt.s32.totalorder %v1107, %v1161
        %vm1176 = vcmp.lt.s32.totalorder %v1108, %v1161
        %vm1177 = vcmp.lt.s32.totalorder %v1109, %v1161
        %vm1178 = vcmp.lt.s32.totalorder %v1110, %v1161
        %vm1179 = vcmp.lt.s32.totalorder %v1111, %v1161
        %vm1180 = vcmp.lt.s32.totalorder %v1112, %v1161
        %vm1181 = vcmp.lt.s32.totalorder %v1113, %v1161
        %vm1182 = vcmp.lt.s32.totalorder %v1114, %v1161
        %vm1183 = vcmp.lt.s32.totalorder %v1115, %v1161
        %vm1184 = vcmp.lt.s32.totalorder %v1116, %v1161
        %vm1185 = vcmp.lt.s32.totalorder %v1117, %v1161
        %vm1186 = vcmp.lt.s32.totalorder %v1118, %v1161
        %vm1187 = vcmp.lt.s32.totalorder %v1119, %v1161
        %vm1188 = vcmp.lt.s32.totalorder %v1120, %v1161
        %vm1189 = vcmp.lt.s32.totalorder %v1121, %v1161
        %vm1190 = vcmp.lt.s32.totalorder %v1122, %v1161
        %vm1191 = vcmp.lt.s32.totalorder %v1123, %v1161
        %vm1192 = vcmp.lt.s32.totalorder %v1124, %v1161
        %vm1193 = vcmp.lt.s32.totalorder %v1125, %v1161
        %vm1194 = vmand %vm1129, %vm1162
        %vm1195 = vmand %vm1130, %vm1163
        %vm1196 = vmand %vm1131, %vm1164
        %vm1197 = vmand %vm1132, %vm1165
        %vm1198 = vmand %vm1133, %vm1166
        %vm1199 = vmand %vm1134, %vm1167
        %vm1200 = vmand %vm1135, %vm1168
        %vm1201 = vmand %vm1136, %vm1169
        %vm1202 = vmand %vm1137, %vm1170
        %vm1203 = vmand %vm1138, %vm1171
        %vm1204 = vmand %vm1139, %vm1172
        %vm1205 = vmand %vm1140, %vm1173
        %vm1206 = vmand %vm1141, %vm1174
        %vm1207 = vmand %vm1142, %vm1175
        %vm1208 = vmand %vm1143, %vm1176
        %vm1209 = vmand %vm1144, %vm1177
        %vm1210 = vmand %vm1145, %vm1178
        %vm1211 = vmand %vm1146, %vm1179
        %vm1212 = vmand %vm1147, %vm1180
        %vm1213 = vmand %vm1148, %vm1181
        %vm1214 = vmand %vm1149, %vm1182
        %vm1215 = vmand %vm1150, %vm1183
        %vm1216 = vmand %vm1151, %vm1184
        %vm1217 = vmand %vm1152, %vm1185
        %vm1218 = vmand %vm1153, %vm1186
        %vm1219 = vmand %vm1154, %vm1187
        %vm1220 = vmand %vm1155, %vm1188
        %vm1221 = vmand %vm1156, %vm1189
        %vm1222 = vmand %vm1157, %vm1190
        %vm1223 = vmand %vm1158, %vm1191
        %vm1224 = vmand %vm1159, %vm1192
        %vm1225 = vmand %vm1160, %vm1193
        %v1226 = vsel %vm1194, 1, 0
        %v1227 = vsel %vm1195, 1, 0
        %v1228 = vsel %vm1196, 1, 0
        %v1229 = vsel %vm1197, 1, 0
        %v1230 = vsel %vm1198, 1, 0
        %v1231 = vsel %vm1199, 1, 0
        %v1232 = vsel %vm1200, 1, 0
        %v1233 = vsel %vm1201, 1, 0
        %v1234 = vsel %vm1202, 1, 0
        %v1235 = vsel %vm1203, 1, 0
        %v1236 = vsel %vm1204, 1, 0
        %v1237 = vsel %vm1205, 1, 0
        %v1238 = vsel %vm1206, 1, 0
        %v1239 = vsel %vm1207, 1, 0
        %v1240 = vsel %vm1208, 1, 0
        %v1241 = vsel %vm1209, 1, 0
        %v1242 = vsel %vm1210, 1, 0
        %v1243 = vsel %vm1211, 1, 0
        %v1244 = vsel %vm1212, 1, 0
        %v1245 = vsel %vm1213, 1, 0
        %v1246 = vsel %vm1214, 1, 0
        %v1247 = vsel %vm1215, 1, 0
        %v1248 = vsel %vm1216, 1, 0
        %v1249 = vsel %vm1217, 1, 0
        %v1250 = vsel %vm1218, 1, 0
        %v1251 = vsel %vm1219, 1, 0
        %v1252 = vsel %vm1220, 1, 0
        %v1253 = vsel %vm1221, 1, 0
        %v1254 = vsel %vm1222, 1, 0
        %v1255 = vsel %vm1223, 1, 0
        %v1256 = vsel %vm1224, 1, 0
        %v1257 = vsel %vm1225, 1, 0
        %v1258 = vcvt.s32.f32 %v1226
        %v1259 = vcvt.s32.f32 %v1227
        %v1260 = vcvt.s32.f32 %v1228
        %v1261 = vcvt.s32.f32 %v1229
        %v1262 = vcvt.s32.f32 %v1230
        %v1263 = vcvt.s32.f32 %v1231
        %v1264 = vcvt.s32.f32 %v1232
        %v1265 = vcvt.s32.f32 %v1233
        %v1266 = vcvt.s32.f32 %v1234
        %v1267 = vcvt.s32.f32 %v1235
        %v1268 = vcvt.s32.f32 %v1236
        %v1269 = vcvt.s32.f32 %v1237
        %v1270 = vcvt.s32.f32 %v1238
        %v1271 = vcvt.s32.f32 %v1239
        %v1272 = vcvt.s32.f32 %v1240
        %v1273 = vcvt.s32.f32 %v1241
        %v1274 = vcvt.s32.f32 %v1242
        %v1275 = vcvt.s32.f32 %v1243
        %v1276 = vcvt.s32.f32 %v1244
        %v1277 = vcvt.s32.f32 %v1245
        %v1278 = vcvt.s32.f32 %v1246
        %v1279 = vcvt.s32.f32 %v1247
        %v1280 = vcvt.s32.f32 %v1248
        %v1281 = vcvt.s32.f32 %v1249
        %v1282 = vcvt.s32.f32 %v1250
        %v1283 = vcvt.s32.f32 %v1251
        %v1284 = vcvt.s32.f32 %v1252
        %v1285 = vcvt.s32.f32 %v1253
        %v1286 = vcvt.s32.f32 %v1254
        %v1287 = vcvt.s32.f32 %v1255
        %v1288 = vcvt.s32.f32 %v1256
        %v1289 = vcvt.s32.f32 %v1257
        %v1290 = vmul.u32 %v1094, 16
        %v1291 = vmul.u32 %v1095, 16
        %v1292 = vadd.s32 %v1127, 128
        %vm1293 = vcmp.ge.s32.totalorder %v1127, %v1290
        %vm1294 = vcmp.ge.s32.totalorder %v1292, %v1290
        %vm1295 = vcmp.ge.s32.totalorder %v1127, %v1291
        %vm1296 = vcmp.ge.s32.totalorder %v1292, %v1291
        %v1297 = vadd.s32 %v1290, 16
        %v1298 = vadd.s32 %v1291, 16
        %vm1299 = vcmp.lt.s32.totalorder %v1127, %v1297
        %vm1300 = vcmp.lt.s32.totalorder %v1292, %v1297
        %vm1301 = vcmp.lt.s32.totalorder %v1127, %v1298
        %vm1302 = vcmp.lt.s32.totalorder %v1292, %v1298
        %vm1303 = vmand %vm1293, %vm1299
        %vm1304 = vmand %vm1294, %vm1300
        %vm1305 = vmand %vm1295, %vm1301
        %vm1306 = vmand %vm1296, %vm1302
        %v1307 = vsel %vm1303, 1, 0
        %v1308 = vsel %vm1304, 1, 0
        %v1309 = vsel %vm1305, 1, 0
        %v1310 = vsel %vm1306, 1, 0
        %v1311 = vcvt.s32.f32 %v1307
        %v1312 = vcvt.s32.f32 %v1308
        %v1313 = vcvt.s32.f32 %v1309
        %v1314 = vcvt.s32.f32 %v1310
        %v1315 = vmul.f32 %v840, %v840
        %v1316 = vmul.f32 %v1079, %v1079
        %v1317 = vmul.f32 %v844, %v844
        %v1318 = vmul.f32 %v1083, %v1083
        %v1319 = vmul.f32 %v848, %v848
        %v1320 = vmul.f32 %v1087, %v1087
        %v1321 = vmul.f32 %v852, %v852
        %v1322 = vmul.f32 %v1091, %v1091
        %v1323 = vand.u32 %v1273, 4294901760
        %1324 = vmatpush.msra.mxu0 %v1323
        %v1325 = vand.u32 %v1272, 4294901760
        %1326 = vmatpush.msra.mxu0 %v1325
        %v1327 = vand.u32 %v1271, 4294901760
        %1328 = vmatpush.msra.mxu0 %v1327
        %v1329 = vand.u32 %v1270, 4294901760
        %1330 = vmatpush.msra.mxu0 %v1329
        %v1331 = vand.u32 %v1269, 4294901760
        %1332 = vmatpush.msra.mxu0 %v1331
        %v1333 = vand.u32 %v1268, 4294901760
        %1334 = vmatpush.msra.mxu0 %v1333
        %v1335 = vand.u32 %v1267, 4294901760
        %1336 = vmatpush.msra.mxu0 %v1335
        %v1337 = vand.u32 %v1266, 4294901760
        %1338 = vmatpush.msra.mxu0 %v1337
        %v1339 = vand.u32 %v1265, 4294901760
        %1340 = vmatpush.msra.mxu0 %v1339
        %v1341 = vand.u32 %v1264, 4294901760
        %1342 = vmatpush.msra.mxu0 %v1341
        %v1343 = vand.u32 %v1263, 4294901760
        %1344 = vmatpush.msra.mxu0 %v1343
        %v1345 = vand.u32 %v1262, 4294901760
        %1346 = vmatpush.msra.mxu0 %v1345
        %v1347 = vand.u32 %v1261, 4294901760
        %1348 = vmatpush.msra.mxu0 %v1347
        %v1349 = vand.u32 %v1260, 4294901760
        %1350 = vmatpush.msra.mxu0 %v1349
        %v1351 = vand.u32 %v1259, 4294901760
        %1352 = vmatpush.msra.mxu0 %v1351
        %v1353 = vand.u32 %v1258, 4294901760
        %1354 = vmatpush.msra.mxu0 %v1353
        %v1355 = vand.u32 %v1315, 4294901760
        %v1356 = vsub.f32 %v1315, %v1355
        %v1357 = vand.u32 %v1356, 4294901760
        %v1358 = vsub.f32 %v1356, %v1357
        %v1359 = vand.u32 %v1358, 4294901760
        %1360 = vmatmul.f32.gmra.mxu0 %v1359
        %v1361 = vpop.f32.mrf.mxu0
        %v1362 = vadd.f32 0.0, %v1361
        %v1363 = vand.u32 %v1317, 4294901760
        %v1364 = vsub.f32 %v1317, %v1363
        %v1365 = vand.u32 %v1364, 4294901760
        %v1366 = vsub.f32 %v1364, %v1365
        %v1367 = vand.u32 %v1366, 4294901760
        %1368 = vmatmul.f32.gmra.mxu0 %v1367
        %v1369 = vpop.f32.mrf.mxu0
        %v1370 = vadd.f32 0.0, %v1369
        %v1371 = vand.u32 %v1319, 4294901760
        %v1372 = vsub.f32 %v1319, %v1371
        %v1373 = vand.u32 %v1372, 4294901760
        %v1374 = vsub.f32 %v1372, %v1373
        %v1375 = vand.u32 %v1374, 4294901760
        %1376 = vmatmul.f32.gmra.mxu0 %v1375
        %v1377 = vpop.f32.mrf.mxu0
        %v1378 = vadd.f32 0.0, %v1377
        %v1379 = vand.u32 %v1321, 4294901760
        %v1380 = vsub.f32 %v1321, %v1379
        %v1381 = vand.u32 %v1380, 4294901760
        %v1382 = vsub.f32 %v1380, %v1381
        %v1383 = vand.u32 %v1382, 4294901760
        %1384 = vmatmul.f32.gmra.mxu0 %v1383
        %v1385 = vpop.f32.mrf.mxu0
        %v1386 = vadd.f32 0.0, %v1385
        %1387 = vdwg.mxu0
        %v1388 = vand.u32 %v1273, 4294901760
        %v1389 = vsub.f32 %v1273, %v1388
        %v1390 = vand.u32 %v1389, 4294901760
        %v1391 = vsub.f32 %v1389, %v1390
        %v1392 = vand.u32 %v1391, 4294901760
        %1393 = vmatpush.msra.mxu0 %v1392
        %v1394 = vand.u32 %v1272, 4294901760
        %v1395 = vsub.f32 %v1272, %v1394
        %v1396 = vand.u32 %v1395, 4294901760
        %v1397 = vsub.f32 %v1395, %v1396
        %v1398 = vand.u32 %v1397, 4294901760
        %1399 = vmatpush.msra.mxu0 %v1398
        %v1400 = vand.u32 %v1271, 4294901760
        %v1401 = vsub.f32 %v1271, %v1400
        %v1402 = vand.u32 %v1401, 4294901760
        %v1403 = vsub.f32 %v1401, %v1402
        %v1404 = vand.u32 %v1403, 4294901760
        %1405 = vmatpush.msra.mxu0 %v1404
        %v1406 = vand.u32 %v1270, 4294901760
        %v1407 = vsub.f32 %v1270, %v1406
        %v1408 = vand.u32 %v1407, 4294901760
        %v1409 = vsub.f32 %v1407, %v1408
        %v1410 = vand.u32 %v1409, 4294901760
        %1411 = vmatpush.msra.mxu0 %v1410
        %v1412 = vand.u32 %v1269, 4294901760
        %v1413 = vsub.f32 %v1269, %v1412
        %v1414 = vand.u32 %v1413, 4294901760
        %v1415 = vsub.f32 %v1413, %v1414
        %v1416 = vand.u32 %v1415, 4294901760
        %1417 = vmatpush.msra.mxu0 %v1416
        %v1418 = vand.u32 %v1268, 4294901760
        %v1419 = vsub.f32 %v1268, %v1418
        %v1420 = vand.u32 %v1419, 4294901760
        %v1421 = vsub.f32 %v1419, %v1420
        %v1422 = vand.u32 %v1421, 4294901760
        %1423 = vmatpush.msra.mxu0 %v1422
        %v1424 = vand.u32 %v1267, 4294901760
        %v1425 = vsub.f32 %v1267, %v1424
        %v1426 = vand.u32 %v1425, 4294901760
        %v1427 = vsub.f32 %v1425, %v1426
        %v1428 = vand.u32 %v1427, 4294901760
        %1429 = vmatpush.msra.mxu0 %v1428
        %v1430 = vand.u32 %v1266, 4294901760
        %v1431 = vsub.f32 %v1266, %v1430
        %v1432 = vand.u32 %v1431, 4294901760
        %v1433 = vsub.f32 %v1431, %v1432
        %v1434 = vand.u32 %v1433, 4294901760
        %1435 = vmatpush.msra.mxu0 %v1434
        %v1436 = vand.u32 %v1265, 4294901760
        %v1437 = vsub.f32 %v1265, %v1436
        %v1438 = vand.u32 %v1437, 4294901760
        %v1439 = vsub.f32 %v1437, %v1438
        %v1440 = vand.u32 %v1439, 4294901760
        %1441 = vmatpush.msra.mxu0 %v1440
        %v1442 = vand.u32 %v1264, 4294901760
        %v1443 = vsub.f32 %v1264, %v1442
        %v1444 = vand.u32 %v1443, 4294901760
        %v1445 = vsub.f32 %v1443, %v1444
        %v1446 = vand.u32 %v1445, 4294901760
        %1447 = vmatpush.msra.mxu0 %v1446
        %v1448 = vand.u32 %v1263, 4294901760
        %v1449 = vsub.f32 %v1263, %v1448
        %v1450 = vand.u32 %v1449, 4294901760
        %v1451 = vsub.f32 %v1449, %v1450
        %v1452 = vand.u32 %v1451, 4294901760
        %1453 = vmatpush.msra.mxu0 %v1452
        %v1454 = vand.u32 %v1262, 4294901760
        %v1455 = vsub.f32 %v1262, %v1454
        %v1456 = vand.u32 %v1455, 4294901760
        %v1457 = vsub.f32 %v1455, %v1456
        %v1458 = vand.u32 %v1457, 4294901760
        %1459 = vmatpush.msra.mxu0 %v1458
        %v1460 = vand.u32 %v1261, 4294901760
        %v1461 = vsub.f32 %v1261, %v1460
        %v1462 = vand.u32 %v1461, 4294901760
        %v1463 = vsub.f32 %v1461, %v1462
        %v1464 = vand.u32 %v1463, 4294901760
        %1465 = vmatpush.msra.mxu0 %v1464
        %v1466 = vand.u32 %v1260, 4294901760
        %v1467 = vsub.f32 %v1260, %v1466
        %v1468 = vand.u32 %v1467, 4294901760
        %v1469 = vsub.f32 %v1467, %v1468
        %v1470 = vand.u32 %v1469, 4294901760
        %1471 = vmatpush.msra.mxu0 %v1470
        %v1472 = vand.u32 %v1259, 4294901760
        %v1473 = vsub.f32 %v1259, %v1472
        %v1474 = vand.u32 %v1473, 4294901760
        %v1475 = vsub.f32 %v1473, %v1474
        %v1476 = vand.u32 %v1475, 4294901760
        %1477 = vmatpush.msra.mxu0 %v1476
        %v1478 = vand.u32 %v1258, 4294901760
        %v1479 = vsub.f32 %v1258, %v1478
        %v1480 = vand.u32 %v1479, 4294901760
        %v1481 = vsub.f32 %v1479, %v1480
        %v1482 = vand.u32 %v1481, 4294901760
        %1483 = vmatpush.msra.mxu0 %v1482
        %v1484 = vand.u32 %v1315, 4294901760
        %1485 = vmatmul.f32.gmra.mxu0 %v1484
        %v1486 = vpop.f32.mrf.mxu0
        %v1487 = vadd.f32 %v1362, %v1486
        %v1488 = vand.u32 %v1317, 4294901760
        %1489 = vmatmul.f32.gmra.mxu0 %v1488
        %v1490 = vpop.f32.mrf.mxu0
        %v1491 = vadd.f32 %v1370, %v1490
        %v1492 = vand.u32 %v1319, 4294901760
        %1493 = vmatmul.f32.gmra.mxu0 %v1492
        %v1494 = vpop.f32.mrf.mxu0
        %v1495 = vadd.f32 %v1378, %v1494
        %v1496 = vand.u32 %v1321, 4294901760
        %1497 = vmatmul.f32.gmra.mxu0 %v1496
        %v1498 = vpop.f32.mrf.mxu0
        %v1499 = vadd.f32 %v1386, %v1498
        %1500 = vdwg.mxu0
        %v1501 = vand.u32 %v1273, 4294901760
        %v1502 = vsub.f32 %v1273, %v1501
        %1503 = vmatpush.msra.mxu0 %v1502
        %v1504 = vand.u32 %v1272, 4294901760
        %v1505 = vsub.f32 %v1272, %v1504
        %1506 = vmatpush.msra.mxu0 %v1505
        %v1507 = vand.u32 %v1271, 4294901760
        %v1508 = vsub.f32 %v1271, %v1507
        %1509 = vmatpush.msra.mxu0 %v1508
        %v1510 = vand.u32 %v1270, 4294901760
        %v1511 = vsub.f32 %v1270, %v1510
        %1512 = vmatpush.msra.mxu0 %v1511
        %v1513 = vand.u32 %v1269, 4294901760
        %v1514 = vsub.f32 %v1269, %v1513
        %1515 = vmatpush.msra.mxu0 %v1514
        %v1516 = vand.u32 %v1268, 4294901760
        %v1517 = vsub.f32 %v1268, %v1516
        %1518 = vmatpush.msra.mxu0 %v1517
        %v1519 = vand.u32 %v1267, 4294901760
        %v1520 = vsub.f32 %v1267, %v1519
        %1521 = vmatpush.msra.mxu0 %v1520
        %v1522 = vand.u32 %v1266, 4294901760
        %v1523 = vsub.f32 %v1266, %v1522
        %1524 = vmatpush.msra.mxu0 %v1523
        %v1525 = vand.u32 %v1265, 4294901760
        %v1526 = vsub.f32 %v1265, %v1525
        %1527 = vmatpush.msra.mxu0 %v1526
        %v1528 = vand.u32 %v1264, 4294901760
        %v1529 = vsub.f32 %v1264, %v1528
        %1530 = vmatpush.msra.mxu0 %v1529
        %v1531 = vand.u32 %v1263, 4294901760
        %v1532 = vsub.f32 %v1263, %v1531
        %1533 = vmatpush.msra.mxu0 %v1532
        %v1534 = vand.u32 %v1262, 4294901760
        %v1535 = vsub.f32 %v1262, %v1534
        %1536 = vmatpush.msra.mxu0 %v1535
        %v1537 = vand.u32 %v1261, 4294901760
        %v1538 = vsub.f32 %v1261, %v1537
        %1539 = vmatpush.msra.mxu0 %v1538
        %v1540 = vand.u32 %v1260, 4294901760
        %v1541 = vsub.f32 %v1260, %v1540
        %1542 = vmatpush.msra.mxu0 %v1541
        %v1543 = vand.u32 %v1259, 4294901760
        %v1544 = vsub.f32 %v1259, %v1543
        %1545 = vmatpush.msra.mxu0 %v1544
        %v1546 = vand.u32 %v1258, 4294901760
        %v1547 = vsub.f32 %v1258, %v1546
        %1548 = vmatpush.msra.mxu0 %v1547
        %v1549 = vand.u32 %v1315, 4294901760
        %v1550 = vsub.f32 %v1315, %v1549
        %1551 = vmatmul.f32.gmra.mxu0 %v1550
        %v1552 = vpop.f32.mrf.mxu0
        %v1553 = vadd.f32 %v1487, %v1552
        %v1554 = vand.u32 %v1317, 4294901760
        %v1555 = vsub.f32 %v1317, %v1554
        %1556 = vmatmul.f32.gmra.mxu0 %v1555
        %v1557 = vpop.f32.mrf.mxu0
        %v1558 = vadd.f32 %v1491, %v1557
        %v1559 = vand.u32 %v1319, 4294901760
        %v1560 = vsub.f32 %v1319, %v1559
        %1561 = vmatmul.f32.gmra.mxu0 %v1560
        %v1562 = vpop.f32.mrf.mxu0
        %v1563 = vadd.f32 %v1495, %v1562
        %v1564 = vand.u32 %v1321, 4294901760
        %v1565 = vsub.f32 %v1321, %v1564
        %1566 = vmatmul.f32.gmra.mxu0 %v1565
        %v1567 = vpop.f32.mrf.mxu0
        %v1568 = vadd.f32 %v1499, %v1567
        %1569 = vdwg.mxu0
        %v1570 = vand.u32 %v1273, 4294901760
        %1571 = vmatpush.msra.mxu0 %v1570
        %v1572 = vand.u32 %v1272, 4294901760
        %1573 = vmatpush.msra.mxu0 %v1572
        %v1574 = vand.u32 %v1271, 4294901760
        %1575 = vmatpush.msra.mxu0 %v1574
        %v1576 = vand.u32 %v1270, 4294901760
        %1577 = vmatpush.msra.mxu0 %v1576
        %v1578 = vand.u32 %v1269, 4294901760
        %1579 = vmatpush.msra.mxu0 %v1578
        %v1580 = vand.u32 %v1268, 4294901760
        %1581 = vmatpush.msra.mxu0 %v1580
        %v1582 = vand.u32 %v1267, 4294901760
        %1583 = vmatpush.msra.mxu0 %v1582
        %v1584 = vand.u32 %v1266, 4294901760
        %1585 = vmatpush.msra.mxu0 %v1584
        %v1586 = vand.u32 %v1265, 4294901760
        %1587 = vmatpush.msra.mxu0 %v1586
        %v1588 = vand.u32 %v1264, 4294901760
        %1589 = vmatpush.msra.mxu0 %v1588
        %v1590 = vand.u32 %v1263, 4294901760
        %1591 = vmatpush.msra.mxu0 %v1590
        %v1592 = vand.u32 %v1262, 4294901760
        %1593 = vmatpush.msra.mxu0 %v1592
        %v1594 = vand.u32 %v1261, 4294901760
        %1595 = vmatpush.msra.mxu0 %v1594
        %v1596 = vand.u32 %v1260, 4294901760
        %1597 = vmatpush.msra.mxu0 %v1596
        %v1598 = vand.u32 %v1259, 4294901760
        %1599 = vmatpush.msra.mxu0 %v1598
        %v1600 = vand.u32 %v1258, 4294901760
        %1601 = vmatpush.msra.mxu0 %v1600
        %v1602 = vand.u32 %v1315, 4294901760
        %v1603 = vsub.f32 %v1315, %v1602
        %v1604 = vand.u32 %v1603, 4294901760
        %1605 = vmatmul.f32.gmra.mxu0 %v1604
        %v1606 = vpop.f32.mrf.mxu0
        %v1607 = vadd.f32 %v1553, %v1606
        %v1608 = vand.u32 %v1317, 4294901760
        %v1609 = vsub.f32 %v1317, %v1608
        %v1610 = vand.u32 %v1609, 4294901760
        %1611 = vmatmul.f32.gmra.mxu0 %v1610
        %v1612 = vpop.f32.mrf.mxu0
        %v1613 = vadd.f32 %v1558, %v1612
        %v1614 = vand.u32 %v1319, 4294901760
        %v1615 = vsub.f32 %v1319, %v1614
        %v1616 = vand.u32 %v1615, 4294901760
        %1617 = vmatmul.f32.gmra.mxu0 %v1616
        %v1618 = vpop.f32.mrf.mxu0
        %v1619 = vadd.f32 %v1563, %v1618
        %v1620 = vand.u32 %v1321, 4294901760
        %v1621 = vsub.f32 %v1321, %v1620
        %v1622 = vand.u32 %v1621, 4294901760
        %1623 = vmatmul.f32.gmra.mxu0 %v1622
        %v1624 = vpop.f32.mrf.mxu0
        %v1625 = vadd.f32 %v1568, %v1624
        %1626 = vdwg.mxu0
        %v1627 = vand.u32 %v1273, 4294901760
        %v1628 = vsub.f32 %v1273, %v1627
        %v1629 = vand.u32 %v1628, 4294901760
        %1630 = vmatpush.msra.mxu0 %v1629
        %v1631 = vand.u32 %v1272, 4294901760
        %v1632 = vsub.f32 %v1272, %v1631
        %v1633 = vand.u32 %v1632, 4294901760
        %1634 = vmatpush.msra.mxu0 %v1633
        %v1635 = vand.u32 %v1271, 4294901760
        %v1636 = vsub.f32 %v1271, %v1635
        %v1637 = vand.u32 %v1636, 4294901760
        %1638 = vmatpush.msra.mxu0 %v1637
        %v1639 = vand.u32 %v1270, 4294901760
        %v1640 = vsub.f32 %v1270, %v1639
        %v1641 = vand.u32 %v1640, 4294901760
        %1642 = vmatpush.msra.mxu0 %v1641
        %v1643 = vand.u32 %v1269, 4294901760
        %v1644 = vsub.f32 %v1269, %v1643
        %v1645 = vand.u32 %v1644, 4294901760
        %1646 = vmatpush.msra.mxu0 %v1645
        %v1647 = vand.u32 %v1268, 4294901760
        %v1648 = vsub.f32 %v1268, %v1647
        %v1649 = vand.u32 %v1648, 4294901760
        %1650 = vmatpush.msra.mxu0 %v1649
        %v1651 = vand.u32 %v1267, 4294901760
        %v1652 = vsub.f32 %v1267, %v1651
        %v1653 = vand.u32 %v1652, 4294901760
        %1654 = vmatpush.msra.mxu0 %v1653
        %v1655 = vand.u32 %v1266, 4294901760
        %v1656 = vsub.f32 %v1266, %v1655
        %v1657 = vand.u32 %v1656, 4294901760
        %1658 = vmatpush.msra.mxu0 %v1657
        %v1659 = vand.u32 %v1265, 4294901760
        %v1660 = vsub.f32 %v1265, %v1659
        %v1661 = vand.u32 %v1660, 4294901760
        %1662 = vmatpush.msra.mxu0 %v1661
        %v1663 = vand.u32 %v1264, 4294901760
        %v1664 = vsub.f32 %v1264, %v1663
        %v1665 = vand.u32 %v1664, 4294901760
        %1666 = vmatpush.msra.mxu0 %v1665
        %v1667 = vand.u32 %v1263, 4294901760
        %v1668 = vsub.f32 %v1263, %v1667
        %v1669 = vand.u32 %v1668, 4294901760
        %1670 = vmatpush.msra.mxu0 %v1669
        %v1671 = vand.u32 %v1262, 4294901760
        %v1672 = vsub.f32 %v1262, %v1671
        %v1673 = vand.u32 %v1672, 4294901760
        %1674 = vmatpush.msra.mxu0 %v1673
        %v1675 = vand.u32 %v1261, 4294901760
        %v1676 = vsub.f32 %v1261, %v1675
        %v1677 = vand.u32 %v1676, 4294901760
        %1678 = vmatpush.msra.mxu0 %v1677
        %v1679 = vand.u32 %v1260, 4294901760
        %v1680 = vsub.f32 %v1260, %v1679
        %v1681 = vand.u32 %v1680, 4294901760
        %1682 = vmatpush.msra.mxu0 %v1681
        %v1683 = vand.u32 %v1259, 4294901760
        %v1684 = vsub.f32 %v1259, %v1683
        %v1685 = vand.u32 %v1684, 4294901760
        %1686 = vmatpush.msra.mxu0 %v1685
        %v1687 = vand.u32 %v1258, 4294901760
        %v1688 = vsub.f32 %v1258, %v1687
        %v1689 = vand.u32 %v1688, 4294901760
        %1690 = vmatpush.msra.mxu0 %v1689
        %v1691 = vand.u32 %v1315, 4294901760
        %1692 = vmatmul.f32.gmra.mxu0 %v1691
        %v1693 = vpop.f32.mrf.mxu0
        %v1694 = vadd.f32 %v1607, %v1693
        %v1695 = vand.u32 %v1317, 4294901760
        %1696 = vmatmul.f32.gmra.mxu0 %v1695
        %v1697 = vpop.f32.mrf.mxu0
        %v1698 = vadd.f32 %v1613, %v1697
        %v1699 = vand.u32 %v1319, 4294901760
        %1700 = vmatmul.f32.gmra.mxu0 %v1699
        %v1701 = vpop.f32.mrf.mxu0
        %v1702 = vadd.f32 %v1619, %v1701
        %v1703 = vand.u32 %v1321, 4294901760
        %1704 = vmatmul.f32.gmra.mxu0 %v1703
        %v1705 = vpop.f32.mrf.mxu0
        %v1706 = vadd.f32 %v1625, %v1705
        %1707 = vdwg.mxu0
        %v1708 = vand.u32 %v1273, 4294901760
        %1709 = vmatpush.msra.mxu0 %v1708
        %v1710 = vand.u32 %v1272, 4294901760
        %1711 = vmatpush.msra.mxu0 %v1710
        %v1712 = vand.u32 %v1271, 4294901760
        %1713 = vmatpush.msra.mxu0 %v1712
        %v1714 = vand.u32 %v1270, 4294901760
        %1715 = vmatpush.msra.mxu0 %v1714
        %v1716 = vand.u32 %v1269, 4294901760
        %1717 = vmatpush.msra.mxu0 %v1716
        %v1718 = vand.u32 %v1268, 4294901760
        %1719 = vmatpush.msra.mxu0 %v1718
        %v1720 = vand.u32 %v1267, 4294901760
        %1721 = vmatpush.msra.mxu0 %v1720
        %v1722 = vand.u32 %v1266, 4294901760
        %1723 = vmatpush.msra.mxu0 %v1722
        %v1724 = vand.u32 %v1265, 4294901760
        %1725 = vmatpush.msra.mxu0 %v1724
        %v1726 = vand.u32 %v1264, 4294901760
        %1727 = vmatpush.msra.mxu0 %v1726
        %v1728 = vand.u32 %v1263, 4294901760
        %1729 = vmatpush.msra.mxu0 %v1728
        %v1730 = vand.u32 %v1262, 4294901760
        %1731 = vmatpush.msra.mxu0 %v1730
        %v1732 = vand.u32 %v1261, 4294901760
        %1733 = vmatpush.msra.mxu0 %v1732
        %v1734 = vand.u32 %v1260, 4294901760
        %1735 = vmatpush.msra.mxu0 %v1734
        %v1736 = vand.u32 %v1259, 4294901760
        %1737 = vmatpush.msra.mxu0 %v1736
        %v1738 = vand.u32 %v1258, 4294901760
        %1739 = vmatpush.msra.mxu0 %v1738
        %v1740 = vand.u32 %v1315, 4294901760
        %1741 = vmatmul.f32.gmra.mxu0 %v1740
        %v1742 = vpop.f32.mrf.mxu0
        %v1743 = vadd.f32 %v1694, %v1742
        %v1744 = vand.u32 %v1317, 4294901760
        %1745 = vmatmul.f32.gmra.mxu0 %v1744
        %v1746 = vpop.f32.mrf.mxu0
        %v1747 = vadd.f32 %v1698, %v1746
        %v1748 = vand.u32 %v1319, 4294901760
        %1749 = vmatmul.f32.gmra.mxu0 %v1748
        %v1750 = vpop.f32.mrf.mxu0
        %v1751 = vadd.f32 %v1702, %v1750
        %v1752 = vand.u32 %v1321, 4294901760
        %1753 = vmatmul.f32.gmra.mxu0 %v1752
        %v1754 = vpop.f32.mrf.mxu0
        %v1755 = vadd.f32 %v1706, %v1754
        %1756 = vdwg.mxu0
        %v1757 = vand.u32 %v1289, 4294901760
        %1758 = vmatpush.msra.mxu0 %v1757
        %v1759 = vand.u32 %v1288, 4294901760
        %1760 = vmatpush.msra.mxu0 %v1759
        %v1761 = vand.u32 %v1287, 4294901760
        %1762 = vmatpush.msra.mxu0 %v1761
        %v1763 = vand.u32 %v1286, 4294901760
        %1764 = vmatpush.msra.mxu0 %v1763
        %v1765 = vand.u32 %v1285, 4294901760
        %1766 = vmatpush.msra.mxu0 %v1765
        %v1767 = vand.u32 %v1284, 4294901760
        %1768 = vmatpush.msra.mxu0 %v1767
        %v1769 = vand.u32 %v1283, 4294901760
        %1770 = vmatpush.msra.mxu0 %v1769
        %v1771 = vand.u32 %v1282, 4294901760
        %1772 = vmatpush.msra.mxu0 %v1771
        %v1773 = vand.u32 %v1281, 4294901760
        %1774 = vmatpush.msra.mxu0 %v1773
        %v1775 = vand.u32 %v1280, 4294901760
        %1776 = vmatpush.msra.mxu0 %v1775
        %v1777 = vand.u32 %v1279, 4294901760
        %1778 = vmatpush.msra.mxu0 %v1777
        %v1779 = vand.u32 %v1278, 4294901760
        %1780 = vmatpush.msra.mxu0 %v1779
        %v1781 = vand.u32 %v1277, 4294901760
        %1782 = vmatpush.msra.mxu0 %v1781
        %v1783 = vand.u32 %v1276, 4294901760
        %1784 = vmatpush.msra.mxu0 %v1783
        %v1785 = vand.u32 %v1275, 4294901760
        %1786 = vmatpush.msra.mxu0 %v1785
        %v1787 = vand.u32 %v1274, 4294901760
        %1788 = vmatpush.msra.mxu0 %v1787
        %v1789 = vand.u32 %v1316, 4294901760
        %v1790 = vsub.f32 %v1316, %v1789
        %v1791 = vand.u32 %v1790, 4294901760
        %v1792 = vsub.f32 %v1790, %v1791
        %v1793 = vand.u32 %v1792, 4294901760
        %1794 = vmatmul.f32.gmra.mxu0 %v1793
        %v1795 = vpop.f32.mrf.mxu0
        %v1796 = vadd.f32 %v1743, %v1795
        %v1797 = vand.u32 %v1318, 4294901760
        %v1798 = vsub.f32 %v1318, %v1797
        %v1799 = vand.u32 %v1798, 4294901760
        %v1800 = vsub.f32 %v1798, %v1799
        %v1801 = vand.u32 %v1800, 4294901760
        %1802 = vmatmul.f32.gmra.mxu0 %v1801
        %v1803 = vpop.f32.mrf.mxu0
        %v1804 = vadd.f32 %v1747, %v1803
        %v1805 = vand.u32 %v1320, 4294901760
        %v1806 = vsub.f32 %v1320, %v1805
        %v1807 = vand.u32 %v1806, 4294901760
        %v1808 = vsub.f32 %v1806, %v1807
        %v1809 = vand.u32 %v1808, 4294901760
        %1810 = vmatmul.f32.gmra.mxu0 %v1809
        %v1811 = vpop.f32.mrf.mxu0
        %v1812 = vadd.f32 %v1751, %v1811
        %v1813 = vand.u32 %v1322, 4294901760
        %v1814 = vsub.f32 %v1322, %v1813
        %v1815 = vand.u32 %v1814, 4294901760
        %v1816 = vsub.f32 %v1814, %v1815
        %v1817 = vand.u32 %v1816, 4294901760
        %1818 = vmatmul.f32.gmra.mxu0 %v1817
        %v1819 = vpop.f32.mrf.mxu0
        %v1820 = vadd.f32 %v1755, %v1819
        %1821 = vdwg.mxu0
        %v1822 = vand.u32 %v1289, 4294901760
        %v1823 = vsub.f32 %v1289, %v1822
        %v1824 = vand.u32 %v1823, 4294901760
        %v1825 = vsub.f32 %v1823, %v1824
        %v1826 = vand.u32 %v1825, 4294901760
        %1827 = vmatpush.msra.mxu0 %v1826
        %v1828 = vand.u32 %v1288, 4294901760
        %v1829 = vsub.f32 %v1288, %v1828
        %v1830 = vand.u32 %v1829, 4294901760
        %v1831 = vsub.f32 %v1829, %v1830
        %v1832 = vand.u32 %v1831, 4294901760
        %1833 = vmatpush.msra.mxu0 %v1832
        %v1834 = vand.u32 %v1287, 4294901760
        %v1835 = vsub.f32 %v1287, %v1834
        %v1836 = vand.u32 %v1835, 4294901760
        %v1837 = vsub.f32 %v1835, %v1836
        %v1838 = vand.u32 %v1837, 4294901760
        %1839 = vmatpush.msra.mxu0 %v1838
        %v1840 = vand.u32 %v1286, 4294901760
        %v1841 = vsub.f32 %v1286, %v1840
        %v1842 = vand.u32 %v1841, 4294901760
        %v1843 = vsub.f32 %v1841, %v1842
        %v1844 = vand.u32 %v1843, 4294901760
        %1845 = vmatpush.msra.mxu0 %v1844
        %v1846 = vand.u32 %v1285, 4294901760
        %v1847 = vsub.f32 %v1285, %v1846
        %v1848 = vand.u32 %v1847, 4294901760
        %v1849 = vsub.f32 %v1847, %v1848
        %v1850 = vand.u32 %v1849, 4294901760
        %1851 = vmatpush.msra.mxu0 %v1850
        %v1852 = vand.u32 %v1284, 4294901760
        %v1853 = vsub.f32 %v1284, %v1852
        %v1854 = vand.u32 %v1853, 4294901760
        %v1855 = vsub.f32 %v1853, %v1854
        %v1856 = vand.u32 %v1855, 4294901760
        %1857 = vmatpush.msra.mxu0 %v1856
        %v1858 = vand.u32 %v1283, 4294901760
        %v1859 = vsub.f32 %v1283, %v1858
        %v1860 = vand.u32 %v1859, 4294901760
        %v1861 = vsub.f32 %v1859, %v1860
        %v1862 = vand.u32 %v1861, 4294901760
        %1863 = vmatpush.msra.mxu0 %v1862
        %v1864 = vand.u32 %v1282, 4294901760
        %v1865 = vsub.f32 %v1282, %v1864
        %v1866 = vand.u32 %v1865, 4294901760
        %v1867 = vsub.f32 %v1865, %v1866
        %v1868 = vand.u32 %v1867, 4294901760
        %1869 = vmatpush.msra.mxu0 %v1868
        %v1870 = vand.u32 %v1281, 4294901760
        %v1871 = vsub.f32 %v1281, %v1870
        %v1872 = vand.u32 %v1871, 4294901760
        %v1873 = vsub.f32 %v1871, %v1872
        %v1874 = vand.u32 %v1873, 4294901760
        %1875 = vmatpush.msra.mxu0 %v1874
        %v1876 = vand.u32 %v1280, 4294901760
        %v1877 = vsub.f32 %v1280, %v1876
        %v1878 = vand.u32 %v1877, 4294901760
        %v1879 = vsub.f32 %v1877, %v1878
        %v1880 = vand.u32 %v1879, 4294901760
        %1881 = vmatpush.msra.mxu0 %v1880
        %v1882 = vand.u32 %v1279, 4294901760
        %v1883 = vsub.f32 %v1279, %v1882
        %v1884 = vand.u32 %v1883, 4294901760
        %v1885 = vsub.f32 %v1883, %v1884
        %v1886 = vand.u32 %v1885, 4294901760
        %1887 = vmatpush.msra.mxu0 %v1886
        %v1888 = vand.u32 %v1278, 4294901760
        %v1889 = vsub.f32 %v1278, %v1888
        %v1890 = vand.u32 %v1889, 4294901760
        %v1891 = vsub.f32 %v1889, %v1890
        %v1892 = vand.u32 %v1891, 4294901760
        %1893 = vmatpush.msra.mxu0 %v1892
        %v1894 = vand.u32 %v1277, 4294901760
        %v1895 = vsub.f32 %v1277, %v1894
        %v1896 = vand.u32 %v1895, 4294901760
        %v1897 = vsub.f32 %v1895, %v1896
        %v1898 = vand.u32 %v1897, 4294901760
        %1899 = vmatpush.msra.mxu0 %v1898
        %v1900 = vand.u32 %v1276, 4294901760
        %v1901 = vsub.f32 %v1276, %v1900
        %v1902 = vand.u32 %v1901, 4294901760
        %v1903 = vsub.f32 %v1901, %v1902
        %v1904 = vand.u32 %v1903, 4294901760
        %1905 = vmatpush.msra.mxu0 %v1904
        %v1906 = vand.u32 %v1275, 4294901760
        %v1907 = vsub.f32 %v1275, %v1906
        %v1908 = vand.u32 %v1907, 4294901760
        %v1909 = vsub.f32 %v1907, %v1908
        %v1910 = vand.u32 %v1909, 4294901760
        %1911 = vmatpush.msra.mxu0 %v1910
        %v1912 = vand.u32 %v1274, 4294901760
        %v1913 = vsub.f32 %v1274, %v1912
        %v1914 = vand.u32 %v1913, 4294901760
        %v1915 = vsub.f32 %v1913, %v1914
        %v1916 = vand.u32 %v1915, 4294901760
        %1917 = vmatpush.msra.mxu0 %v1916
        %v1918 = vand.u32 %v1316, 4294901760
        %1919 = vmatmul.f32.gmra.mxu0 %v1918
        %v1920 = vpop.f32.mrf.mxu0
        %v1921 = vadd.f32 %v1796, %v1920
        %v1922 = vand.u32 %v1318, 4294901760
        %1923 = vmatmul.f32.gmra.mxu0 %v1922
        %v1924 = vpop.f32.mrf.mxu0
        %v1925 = vadd.f32 %v1804, %v1924
        %v1926 = vand.u32 %v1320, 4294901760
        %1927 = vmatmul.f32.gmra.mxu0 %v1926
        %v1928 = vpop.f32.mrf.mxu0
        %v1929 = vadd.f32 %v1812, %v1928
        %v1930 = vand.u32 %v1322, 4294901760
        %1931 = vmatmul.f32.gmra.mxu0 %v1930
        %v1932 = vpop.f32.mrf.mxu0
        %v1933 = vadd.f32 %v1820, %v1932
        %1934 = vdwg.mxu0
        %v1935 = vand.u32 %v1289, 4294901760
        %v1936 = vsub.f32 %v1289, %v1935
        %1937 = vmatpush.msra.mxu0 %v1936
        %v1938 = vand.u32 %v1288, 4294901760
        %v1939 = vsub.f32 %v1288, %v1938
        %1940 = vmatpush.msra.mxu0 %v1939
        %v1941 = vand.u32 %v1287, 4294901760
        %v1942 = vsub.f32 %v1287, %v1941
        %1943 = vmatpush.msra.mxu0 %v1942
        %v1944 = vand.u32 %v1286, 4294901760
        %v1945 = vsub.f32 %v1286, %v1944
        %1946 = vmatpush.msra.mxu0 %v1945
        %v1947 = vand.u32 %v1285, 4294901760
        %v1948 = vsub.f32 %v1285, %v1947
        %1949 = vmatpush.msra.mxu0 %v1948
        %v1950 = vand.u32 %v1284, 4294901760
        %v1951 = vsub.f32 %v1284, %v1950
        %1952 = vmatpush.msra.mxu0 %v1951
        %v1953 = vand.u32 %v1283, 4294901760
        %v1954 = vsub.f32 %v1283, %v1953
        %1955 = vmatpush.msra.mxu0 %v1954
        %v1956 = vand.u32 %v1282, 4294901760
        %v1957 = vsub.f32 %v1282, %v1956
        %1958 = vmatpush.msra.mxu0 %v1957
        %v1959 = vand.u32 %v1281, 4294901760
        %v1960 = vsub.f32 %v1281, %v1959
        %1961 = vmatpush.msra.mxu0 %v1960
        %v1962 = vand.u32 %v1280, 4294901760
        %v1963 = vsub.f32 %v1280, %v1962
        %1964 = vmatpush.msra.mxu0 %v1963
        %v1965 = vand.u32 %v1279, 4294901760
        %v1966 = vsub.f32 %v1279, %v1965
        %1967 = vmatpush.msra.mxu0 %v1966
        %v1968 = vand.u32 %v1278, 4294901760
        %v1969 = vsub.f32 %v1278, %v1968
        %1970 = vmatpush.msra.mxu0 %v1969
        %v1971 = vand.u32 %v1277, 4294901760
        %v1972 = vsub.f32 %v1277, %v1971
        %1973 = vmatpush.msra.mxu0 %v1972
        %v1974 = vand.u32 %v1276, 4294901760
        %v1975 = vsub.f32 %v1276, %v1974
        %1976 = vmatpush.msra.mxu0 %v1975
        %v1977 = vand.u32 %v1275, 4294901760
        %v1978 = vsub.f32 %v1275, %v1977
        %1979 = vmatpush.msra.mxu0 %v1978
        %v1980 = vand.u32 %v1274, 4294901760
        %v1981 = vsub.f32 %v1274, %v1980
        %1982 = vmatpush.msra.mxu0 %v1981
        %v1983 = vand.u32 %v1316, 4294901760
        %v1984 = vsub.f32 %v1316, %v1983
        %1985 = vmatmul.f32.gmra.mxu0 %v1984
        %v1986 = vpop.f32.mrf.mxu0
        %v1987 = vadd.f32 %v1921, %v1986
        %v1988 = vand.u32 %v1318, 4294901760
        %v1989 = vsub.f32 %v1318, %v1988
        %1990 = vmatmul.f32.gmra.mxu0 %v1989
        %v1991 = vpop.f32.mrf.mxu0
        %v1992 = vadd.f32 %v1925, %v1991
        %v1993 = vand.u32 %v1320, 4294901760
        %v1994 = vsub.f32 %v1320, %v1993
        %1995 = vmatmul.f32.gmra.mxu0 %v1994
        %v1996 = vpop.f32.mrf.mxu0
        %v1997 = vadd.f32 %v1929, %v1996
        %v1998 = vand.u32 %v1322, 4294901760
        %v1999 = vsub.f32 %v1322, %v1998
        %2000 = vmatmul.f32.gmra.mxu0 %v1999
        %v2001 = vpop.f32.mrf.mxu0
        %v2002 = vadd.f32 %v1933, %v2001
        %2003 = vdwg.mxu0
        %v2004 = vand.u32 %v1289, 4294901760
        %2005 = vmatpush.msra.mxu0 %v2004
        %v2006 = vand.u32 %v1288, 4294901760
        %2007 = vmatpush.msra.mxu0 %v2006
        %v2008 = vand.u32 %v1287, 4294901760
        %2009 = vmatpush.msra.mxu0 %v2008
        %v2010 = vand.u32 %v1286, 4294901760
        %2011 = vmatpush.msra.mxu0 %v2010
        %v2012 = vand.u32 %v1285, 4294901760
        %2013 = vmatpush.msra.mxu0 %v2012
        %v2014 = vand.u32 %v1284, 4294901760
        %2015 = vmatpush.msra.mxu0 %v2014
        %v2016 = vand.u32 %v1283, 4294901760
        %2017 = vmatpush.msra.mxu0 %v2016
        %v2018 = vand.u32 %v1282, 4294901760
        %2019 = vmatpush.msra.mxu0 %v2018
        %v2020 = vand.u32 %v1281, 4294901760
        %2021 = vmatpush.msra.mxu0 %v2020
        %v2022 = vand.u32 %v1280, 4294901760
        %2023 = vmatpush.msra.mxu0 %v2022
        %v2024 = vand.u32 %v1279, 4294901760
        %2025 = vmatpush.msra.mxu0 %v2024
        %v2026 = vand.u32 %v1278, 4294901760
        %2027 = vmatpush.msra.mxu0 %v2026
        %v2028 = vand.u32 %v1277, 4294901760
        %2029 = vmatpush.msra.mxu0 %v2028
        %v2030 = vand.u32 %v1276, 4294901760
        %2031 = vmatpush.msra.mxu0 %v2030
        %v2032 = vand.u32 %v1275, 4294901760
        %2033 = vmatpush.msra.mxu0 %v2032
        %v2034 = vand.u32 %v1274, 4294901760
        %2035 = vmatpush.msra.mxu0 %v2034
        %v2036 = vand.u32 %v1316, 4294901760
        %v2037 = vsub.f32 %v1316, %v2036
        %v2038 = vand.u32 %v2037, 4294901760
        %2039 = vmatmul.f32.gmra.mxu0 %v2038
        %v2040 = vpop.f32.mrf.mxu0
        %v2041 = vadd.f32 %v1987, %v2040
        %v2042 = vand.u32 %v1318, 4294901760
        %v2043 = vsub.f32 %v1318, %v2042
        %v2044 = vand.u32 %v2043, 4294901760
        %2045 = vmatmul.f32.gmra.mxu0 %v2044
        %v2046 = vpop.f32.mrf.mxu0
        %v2047 = vadd.f32 %v1992, %v2046
        %v2048 = vand.u32 %v1320, 4294901760
        %v2049 = vsub.f32 %v1320, %v2048
        %v2050 = vand.u32 %v2049, 4294901760
        %2051 = vmatmul.f32.gmra.mxu0 %v2050
        %v2052 = vpop.f32.mrf.mxu0
        %v2053 = vadd.f32 %v1997, %v2052
        %v2054 = vand.u32 %v1322, 4294901760
        %v2055 = vsub.f32 %v1322, %v2054
        %v2056 = vand.u32 %v2055, 4294901760
        %2057 = vmatmul.f32.gmra.mxu0 %v2056
        %v2058 = vpop.f32.mrf.mxu0
        %v2059 = vadd.f32 %v2002, %v2058
        %2060 = vdwg.mxu0
        %v2061 = vand.u32 %v1289, 4294901760
        %v2062 = vsub.f32 %v1289, %v2061
        %v2063 = vand.u32 %v2062, 4294901760
        %2064 = vmatpush.msra.mxu0 %v2063
        %v2065 = vand.u32 %v1288, 4294901760
        %v2066 = vsub.f32 %v1288, %v2065
        %v2067 = vand.u32 %v2066, 4294901760
        %2068 = vmatpush.msra.mxu0 %v2067
        %v2069 = vand.u32 %v1287, 4294901760
        %v2070 = vsub.f32 %v1287, %v2069
        %v2071 = vand.u32 %v2070, 4294901760
        %2072 = vmatpush.msra.mxu0 %v2071
        %v2073 = vand.u32 %v1286, 4294901760
        %v2074 = vsub.f32 %v1286, %v2073
        %v2075 = vand.u32 %v2074, 4294901760
        %2076 = vmatpush.msra.mxu0 %v2075
        %v2077 = vand.u32 %v1285, 4294901760
        %v2078 = vsub.f32 %v1285, %v2077
        %v2079 = vand.u32 %v2078, 4294901760
        %2080 = vmatpush.msra.mxu0 %v2079
        %v2081 = vand.u32 %v1284, 4294901760
        %v2082 = vsub.f32 %v1284, %v2081
        %v2083 = vand.u32 %v2082, 4294901760
        %2084 = vmatpush.msra.mxu0 %v2083
        %v2085 = vand.u32 %v1283, 4294901760
        %v2086 = vsub.f32 %v1283, %v2085
        %v2087 = vand.u32 %v2086, 4294901760
        %2088 = vmatpush.msra.mxu0 %v2087
        %v2089 = vand.u32 %v1282, 4294901760
        %v2090 = vsub.f32 %v1282, %v2089
        %v2091 = vand.u32 %v2090, 4294901760
        %2092 = vmatpush.msra.mxu0 %v2091
        %v2093 = vand.u32 %v1281, 4294901760
        %v2094 = vsub.f32 %v1281, %v2093
        %v2095 = vand.u32 %v2094, 4294901760
        %2096 = vmatpush.msra.mxu0 %v2095
        %v2097 = vand.u32 %v1280, 4294901760
        %v2098 = vsub.f32 %v1280, %v2097
        %v2099 = vand.u32 %v2098, 4294901760
        %2100 = vmatpush.msra.mxu0 %v2099
        %v2101 = vand.u32 %v1279, 4294901760
        %v2102 = vsub.f32 %v1279, %v2101
        %v2103 = vand.u32 %v2102, 4294901760
        %2104 = vmatpush.msra.mxu0 %v2103
        %v2105 = vand.u32 %v1278, 4294901760
        %v2106 = vsub.f32 %v1278, %v2105
        %v2107 = vand.u32 %v2106, 4294901760
        %2108 = vmatpush.msra.mxu0 %v2107
        %v2109 = vand.u32 %v1277, 4294901760
        %v2110 = vsub.f32 %v1277, %v2109
        %v2111 = vand.u32 %v2110, 4294901760
        %2112 = vmatpush.msra.mxu0 %v2111
        %v2113 = vand.u32 %v1276, 4294901760
        %v2114 = vsub.f32 %v1276, %v2113
        %v2115 = vand.u32 %v2114, 4294901760
        %2116 = vmatpush.msra.mxu0 %v2115
        %v2117 = vand.u32 %v1275, 4294901760
        %v2118 = vsub.f32 %v1275, %v2117
        %v2119 = vand.u32 %v2118, 4294901760
        %2120 = vmatpush.msra.mxu0 %v2119
        %v2121 = vand.u32 %v1274, 4294901760
        %v2122 = vsub.f32 %v1274, %v2121
        %v2123 = vand.u32 %v2122, 4294901760
        %2124 = vmatpush.msra.mxu0 %v2123
        %v2125 = vand.u32 %v1316, 4294901760
        %2126 = vmatmul.f32.gmra.mxu0 %v2125
        %v2127 = vpop.f32.mrf.mxu0
        %v2128 = vadd.f32 %v2041, %v2127
        %v2129 = vand.u32 %v1318, 4294901760
        %2130 = vmatmul.f32.gmra.mxu0 %v2129
        %v2131 = vpop.f32.mrf.mxu0
        %v2132 = vadd.f32 %v2047, %v2131
        %v2133 = vand.u32 %v1320, 4294901760
        %2134 = vmatmul.f32.gmra.mxu0 %v2133
        %v2135 = vpop.f32.mrf.mxu0
        %v2136 = vadd.f32 %v2053, %v2135
        %v2137 = vand.u32 %v1322, 4294901760
        %2138 = vmatmul.f32.gmra.mxu0 %v2137
        %v2139 = vpop.f32.mrf.mxu0
        %v2140 = vadd.f32 %v2059, %v2139
        %2141 = vdwg.mxu0
        %v2142 = vand.u32 %v1289, 4294901760
        %2143 = vmatpush.msra.mxu0 %v2142
        %v2144 = vand.u32 %v1288, 4294901760
        %2145 = vmatpush.msra.mxu0 %v2144
        %v2146 = vand.u32 %v1287, 4294901760
        %2147 = vmatpush.msra.mxu0 %v2146
        %v2148 = vand.u32 %v1286, 4294901760
        %2149 = vmatpush.msra.mxu0 %v2148
        %v2150 = vand.u32 %v1285, 4294901760
        %2151 = vmatpush.msra.mxu0 %v2150
        %v2152 = vand.u32 %v1284, 4294901760
        %2153 = vmatpush.msra.mxu0 %v2152
        %v2154 = vand.u32 %v1283, 4294901760
        %2155 = vmatpush.msra.mxu0 %v2154
        %v2156 = vand.u32 %v1282, 4294901760
        %2157 = vmatpush.msra.mxu0 %v2156
        %v2158 = vand.u32 %v1281, 4294901760
        %2159 = vmatpush.msra.mxu0 %v2158
        %v2160 = vand.u32 %v1280, 4294901760
        %2161 = vmatpush.msra.mxu0 %v2160
        %v2162 = vand.u32 %v1279, 4294901760
        %2163 = vmatpush.msra.mxu0 %v2162
        %v2164 = vand.u32 %v1278, 4294901760
        %2165 = vmatpush.msra.mxu0 %v2164
        %v2166 = vand.u32 %v1277, 4294901760
        %2167 = vmatpush.msra.mxu0 %v2166
        %v2168 = vand.u32 %v1276, 4294901760
        %2169 = vmatpush.msra.mxu0 %v2168
        %v2170 = vand.u32 %v1275, 4294901760
        %2171 = vmatpush.msra.mxu0 %v2170
        %v2172 = vand.u32 %v1274, 4294901760
        %2173 = vmatpush.msra.mxu0 %v2172
        %v2174 = vand.u32 %v1316, 4294901760
        %2175 = vmatmul.f32.gmra.mxu0 %v2174
        %v2176 = vpop.f32.mrf.mxu0
        %v2177 = vadd.f32 %v2128, %v2176
        %v2178 = vand.u32 %v1318, 4294901760
        %2179 = vmatmul.f32.gmra.mxu0 %v2178
        %v2180 = vpop.f32.mrf.mxu0
        %v2181 = vadd.f32 %v2132, %v2180
        %v2182 = vand.u32 %v1320, 4294901760
        %2183 = vmatmul.f32.gmra.mxu0 %v2182
        %v2184 = vpop.f32.mrf.mxu0
        %v2185 = vadd.f32 %v2136, %v2184
        %v2186 = vand.u32 %v1322, 4294901760
        %2187 = vmatmul.f32.gmra.mxu0 %v2186
        %v2188 = vpop.f32.mrf.mxu0
        %v2189 = vadd.f32 %v2140, %v2188
        %2190 = vdwg.mxu0
        %v2191 = vmax.f32 %v2177, 1e-24
        %v2192 = vmax.f32 %v2181, 1e-24
        %v2193 = vmax.f32 %v2185, 1e-24
        %v2194 = vmax.f32 %v2189, 1e-24
        %v2195 = vrsqrt.pop %v2191
        %v2196 = vmul.f32 %v2195, %v2191
        %v2197 = vmul.f32 %v2196, %v2195
        %v2198 = vmul.f32 0.5, %v2197
        %v2199 = vsub.f32 1.5, %v2198
        %v2200 = vmul.f32 %v2195, %v2199
        %vm2201 = vweird.f32 %v2191
        %vm2202 = vweird.f32 %v2195
        %vm2203 = vmor %vm2201, %vm2202
        %v2204 = vsel %vm2203, %v2195, %v2200
        %v2205 = vrsqrt.pop %v2192
        %v2206 = vmul.f32 %v2205, %v2192
        %v2207 = vmul.f32 %v2206, %v2205
        %v2208 = vmul.f32 0.5, %v2207
        %v2209 = vsub.f32 1.5, %v2208
        %v2210 = vmul.f32 %v2205, %v2209
        %vm2211 = vweird.f32 %v2192
        %vm2212 = vweird.f32 %v2205
        %vm2213 = vmor %vm2211, %vm2212
        %v2214 = vsel %vm2213, %v2205, %v2210
        %v2215 = vrsqrt.pop %v2193
        %v2216 = vmul.f32 %v2215, %v2193
        %v2217 = vmul.f32 %v2216, %v2215
        %v2218 = vmul.f32 0.5, %v2217
        %v2219 = vsub.f32 1.5, %v2218
        %v2220 = vmul.f32 %v2215, %v2219
        %vm2221 = vweird.f32 %v2193
        %vm2222 = vweird.f32 %v2215
        %vm2223 = vmor %vm2221, %vm2222
        %v2224 = vsel %vm2223, %v2215, %v2220
        %v2225 = vrsqrt.pop %v2194
        %v2226 = vmul.f32 %v2225, %v2194
        %v2227 = vmul.f32 %v2226, %v2225
        %v2228 = vmul.f32 0.5, %v2227
        %v2229 = vsub.f32 1.5, %v2228
        %v2230 = vmul.f32 %v2225, %v2229
        %vm2231 = vweird.f32 %v2194
        %vm2232 = vweird.f32 %v2225
        %vm2233 = vmor %vm2231, %vm2232
        %v2234 = vsel %vm2233, %v2225, %v2230
        %vm2235 = vcmask 130048
        %v2237 = vsel %vm2235, %v2204, 0
        %v2240 = vsel %vm2235, %v2214, 0
        %v2243 = vsel %vm2235, %v2224, 0
        %v2246 = vsel %vm2235, %v2234, 0
        %2248 = vmatpush.msra.mxu0 0.0
        %2249 = vmatpush.msra.mxu0 0.0
        %2250 = vmatpush.msra.mxu0 0.0
        %2251 = vmatpush.msra.mxu0 0.0
        %2252 = vmatpush.msra.mxu0 0.0
        %2253 = vmatpush.msra.mxu0 0.0
        %2254 = vmatpush.msra.mxu0 0.0
        %2255 = vmatpush.msra.mxu0 0.0
        %2256 = vmatpush.msra.mxu0 0.0
        %2257 = vmatpush.msra.mxu0 0.0
        %2258 = vmatpush.msra.mxu0 0.0
        %2259 = vmatpush.msra.mxu0 0.0
        %2260 = vmatpush.msra.mxu0 0.0
        %2261 = vmatpush.msra.mxu0 0.0
        %v2262 = vand.u32 %v1313, 4294901760
        %2263 = vmatpush.msra.mxu0 %v2262
        %v2264 = vand.u32 %v1311, 4294901760
        %2265 = vmatpush.msra.mxu0 %v2264
        %v2266 = vand.u32 %v2237, 4294901760
        %v2267 = vsub.f32 %v2237, %v2266
        %v2268 = vand.u32 %v2267, 4294901760
        %v2269 = vsub.f32 %v2267, %v2268
        %v2270 = vand.u32 %v2269, 4294901760
        %2271 = vmatmul.f32.gmra.mxu0 %v2270
        %v2272 = vpop.f32.mrf.mxu0
        %v2273 = vadd.f32 0.0, %v2272
        %v2274 = vand.u32 %v2240, 4294901760
        %v2275 = vsub.f32 %v2240, %v2274
        %v2276 = vand.u32 %v2275, 4294901760
        %v2277 = vsub.f32 %v2275, %v2276
        %v2278 = vand.u32 %v2277, 4294901760
        %2279 = vmatmul.f32.gmra.mxu0 %v2278
        %v2280 = vpop.f32.mrf.mxu0
        %v2281 = vadd.f32 0.0, %v2280
        %v2282 = vand.u32 %v2243, 4294901760
        %v2283 = vsub.f32 %v2243, %v2282
        %v2284 = vand.u32 %v2283, 4294901760
        %v2285 = vsub.f32 %v2283, %v2284
        %v2286 = vand.u32 %v2285, 4294901760
        %2287 = vmatmul.f32.gmra.mxu0 %v2286
        %v2288 = vpop.f32.mrf.mxu0
        %v2289 = vadd.f32 0.0, %v2288
        %v2290 = vand.u32 %v2246, 4294901760
        %v2291 = vsub.f32 %v2246, %v2290
        %v2292 = vand.u32 %v2291, 4294901760
        %v2293 = vsub.f32 %v2291, %v2292
        %v2294 = vand.u32 %v2293, 4294901760
        %2295 = vmatmul.f32.gmra.mxu0 %v2294
        %v2296 = vpop.f32.mrf.mxu0
        %v2297 = vadd.f32 0.0, %v2296
        %2298 = vdwg.mxu0
        %2299 = vmatpush.msra.mxu0 0.0
        %2300 = vmatpush.msra.mxu0 0.0
        %2301 = vmatpush.msra.mxu0 0.0
        %2302 = vmatpush.msra.mxu0 0.0
        %2303 = vmatpush.msra.mxu0 0.0
        %2304 = vmatpush.msra.mxu0 0.0
        %2305 = vmatpush.msra.mxu0 0.0
        %2306 = vmatpush.msra.mxu0 0.0
        %2307 = vmatpush.msra.mxu0 0.0
        %2308 = vmatpush.msra.mxu0 0.0
        %2309 = vmatpush.msra.mxu0 0.0
        %2310 = vmatpush.msra.mxu0 0.0
        %2311 = vmatpush.msra.mxu0 0.0
        %2312 = vmatpush.msra.mxu0 0.0
        %v2313 = vand.u32 %v1313, 4294901760
        %v2314 = vsub.f32 %v1313, %v2313
        %v2315 = vand.u32 %v2314, 4294901760
        %v2316 = vsub.f32 %v2314, %v2315
        %v2317 = vand.u32 %v2316, 4294901760
        %2318 = vmatpush.msra.mxu0 %v2317
        %v2319 = vand.u32 %v1311, 4294901760
        %v2320 = vsub.f32 %v1311, %v2319
        %v2321 = vand.u32 %v2320, 4294901760
        %v2322 = vsub.f32 %v2320, %v2321
        %v2323 = vand.u32 %v2322, 4294901760
        %2324 = vmatpush.msra.mxu0 %v2323
        %v2325 = vand.u32 %v2237, 4294901760
        %2326 = vmatmul.f32.gmra.mxu0 %v2325
        %v2327 = vpop.f32.mrf.mxu0
        %v2328 = vadd.f32 %v2273, %v2327
        %v2329 = vand.u32 %v2240, 4294901760
        %2330 = vmatmul.f32.gmra.mxu0 %v2329
        %v2331 = vpop.f32.mrf.mxu0
        %v2332 = vadd.f32 %v2281, %v2331
        %v2333 = vand.u32 %v2243, 4294901760
        %2334 = vmatmul.f32.gmra.mxu0 %v2333
        %v2335 = vpop.f32.mrf.mxu0
        %v2336 = vadd.f32 %v2289, %v2335
        %v2337 = vand.u32 %v2246, 4294901760
        %2338 = vmatmul.f32.gmra.mxu0 %v2337
        %v2339 = vpop.f32.mrf.mxu0
        %v2340 = vadd.f32 %v2297, %v2339
        %2341 = vdwg.mxu0
        %2342 = vmatpush.msra.mxu0 0.0
        %2343 = vmatpush.msra.mxu0 0.0
        %2344 = vmatpush.msra.mxu0 0.0
        %2345 = vmatpush.msra.mxu0 0.0
        %2346 = vmatpush.msra.mxu0 0.0
        %2347 = vmatpush.msra.mxu0 0.0
        %2348 = vmatpush.msra.mxu0 0.0
        %2349 = vmatpush.msra.mxu0 0.0
        %2350 = vmatpush.msra.mxu0 0.0
        %2351 = vmatpush.msra.mxu0 0.0
        %2352 = vmatpush.msra.mxu0 0.0
        %2353 = vmatpush.msra.mxu0 0.0
        %2354 = vmatpush.msra.mxu0 0.0
        %2355 = vmatpush.msra.mxu0 0.0
        %v2356 = vand.u32 %v1313, 4294901760
        %v2357 = vsub.f32 %v1313, %v2356
        %2358 = vmatpush.msra.mxu0 %v2357
        %v2359 = vand.u32 %v1311, 4294901760
        %v2360 = vsub.f32 %v1311, %v2359
        %2361 = vmatpush.msra.mxu0 %v2360
        %v2362 = vand.u32 %v2237, 4294901760
        %v2363 = vsub.f32 %v2237, %v2362
        %2364 = vmatmul.f32.gmra.mxu0 %v2363
        %v2365 = vpop.f32.mrf.mxu0
        %v2366 = vadd.f32 %v2328, %v2365
        %v2367 = vand.u32 %v2240, 4294901760
        %v2368 = vsub.f32 %v2240, %v2367
        %2369 = vmatmul.f32.gmra.mxu0 %v2368
        %v2370 = vpop.f32.mrf.mxu0
        %v2371 = vadd.f32 %v2332, %v2370
        %v2372 = vand.u32 %v2243, 4294901760
        %v2373 = vsub.f32 %v2243, %v2372
        %2374 = vmatmul.f32.gmra.mxu0 %v2373
        %v2375 = vpop.f32.mrf.mxu0
        %v2376 = vadd.f32 %v2336, %v2375
        %v2377 = vand.u32 %v2246, 4294901760
        %v2378 = vsub.f32 %v2246, %v2377
        %2379 = vmatmul.f32.gmra.mxu0 %v2378
        %v2380 = vpop.f32.mrf.mxu0
        %v2381 = vadd.f32 %v2340, %v2380
        %2382 = vdwg.mxu0
        %2383 = vmatpush.msra.mxu0 0.0
        %2384 = vmatpush.msra.mxu0 0.0
        %2385 = vmatpush.msra.mxu0 0.0
        %2386 = vmatpush.msra.mxu0 0.0
        %2387 = vmatpush.msra.mxu0 0.0
        %2388 = vmatpush.msra.mxu0 0.0
        %2389 = vmatpush.msra.mxu0 0.0
        %2390 = vmatpush.msra.mxu0 0.0
        %2391 = vmatpush.msra.mxu0 0.0
        %2392 = vmatpush.msra.mxu0 0.0
        %2393 = vmatpush.msra.mxu0 0.0
        %2394 = vmatpush.msra.mxu0 0.0
        %2395 = vmatpush.msra.mxu0 0.0
        %2396 = vmatpush.msra.mxu0 0.0
        %v2397 = vand.u32 %v1313, 4294901760
        %2398 = vmatpush.msra.mxu0 %v2397
        %v2399 = vand.u32 %v1311, 4294901760
        %2400 = vmatpush.msra.mxu0 %v2399
        %v2401 = vand.u32 %v2237, 4294901760
        %v2402 = vsub.f32 %v2237, %v2401
        %v2403 = vand.u32 %v2402, 4294901760
        %2404 = vmatmul.f32.gmra.mxu0 %v2403
        %v2405 = vpop.f32.mrf.mxu0
        %v2406 = vadd.f32 %v2366, %v2405
        %v2407 = vand.u32 %v2240, 4294901760
        %v2408 = vsub.f32 %v2240, %v2407
        %v2409 = vand.u32 %v2408, 4294901760
        %2410 = vmatmul.f32.gmra.mxu0 %v2409
        %v2411 = vpop.f32.mrf.mxu0
        %v2412 = vadd.f32 %v2371, %v2411
        %v2413 = vand.u32 %v2243, 4294901760
        %v2414 = vsub.f32 %v2243, %v2413
        %v2415 = vand.u32 %v2414, 4294901760
        %2416 = vmatmul.f32.gmra.mxu0 %v2415
        %v2417 = vpop.f32.mrf.mxu0
        %v2418 = vadd.f32 %v2376, %v2417
        %v2419 = vand.u32 %v2246, 4294901760
        %v2420 = vsub.f32 %v2246, %v2419
        %v2421 = vand.u32 %v2420, 4294901760
        %2422 = vmatmul.f32.gmra.mxu0 %v2421
        %v2423 = vpop.f32.mrf.mxu0
        %v2424 = vadd.f32 %v2381, %v2423
        %2425 = vdwg.mxu0
        %2426 = vmatpush.msra.mxu0 0.0
        %2427 = vmatpush.msra.mxu0 0.0
        %2428 = vmatpush.msra.mxu0 0.0
        %2429 = vmatpush.msra.mxu0 0.0
        %2430 = vmatpush.msra.mxu0 0.0
        %2431 = vmatpush.msra.mxu0 0.0
        %2432 = vmatpush.msra.mxu0 0.0
        %2433 = vmatpush.msra.mxu0 0.0
        %2434 = vmatpush.msra.mxu0 0.0
        %2435 = vmatpush.msra.mxu0 0.0
        %2436 = vmatpush.msra.mxu0 0.0
        %2437 = vmatpush.msra.mxu0 0.0
        %2438 = vmatpush.msra.mxu0 0.0
        %2439 = vmatpush.msra.mxu0 0.0
        %v2440 = vand.u32 %v1313, 4294901760
        %v2441 = vsub.f32 %v1313, %v2440
        %v2442 = vand.u32 %v2441, 4294901760
        %2443 = vmatpush.msra.mxu0 %v2442
        %v2444 = vand.u32 %v1311, 4294901760
        %v2445 = vsub.f32 %v1311, %v2444
        %v2446 = vand.u32 %v2445, 4294901760
        %2447 = vmatpush.msra.mxu0 %v2446
        %v2448 = vand.u32 %v2237, 4294901760
        %2449 = vmatmul.f32.gmra.mxu0 %v2448
        %v2450 = vpop.f32.mrf.mxu0
        %v2451 = vadd.f32 %v2406, %v2450
        %v2452 = vand.u32 %v2240, 4294901760
        %2453 = vmatmul.f32.gmra.mxu0 %v2452
        %v2454 = vpop.f32.mrf.mxu0
        %v2455 = vadd.f32 %v2412, %v2454
        %v2456 = vand.u32 %v2243, 4294901760
        %2457 = vmatmul.f32.gmra.mxu0 %v2456
        %v2458 = vpop.f32.mrf.mxu0
        %v2459 = vadd.f32 %v2418, %v2458
        %v2460 = vand.u32 %v2246, 4294901760
        %2461 = vmatmul.f32.gmra.mxu0 %v2460
        %v2462 = vpop.f32.mrf.mxu0
        %v2463 = vadd.f32 %v2424, %v2462
        %2464 = vdwg.mxu0
        %2465 = vmatpush.msra.mxu0 0.0
        %2466 = vmatpush.msra.mxu0 0.0
        %2467 = vmatpush.msra.mxu0 0.0
        %2468 = vmatpush.msra.mxu0 0.0
        %2469 = vmatpush.msra.mxu0 0.0
        %2470 = vmatpush.msra.mxu0 0.0
        %2471 = vmatpush.msra.mxu0 0.0
        %2472 = vmatpush.msra.mxu0 0.0
        %2473 = vmatpush.msra.mxu0 0.0
        %2474 = vmatpush.msra.mxu0 0.0
        %2475 = vmatpush.msra.mxu0 0.0
        %2476 = vmatpush.msra.mxu0 0.0
        %2477 = vmatpush.msra.mxu0 0.0
        %2478 = vmatpush.msra.mxu0 0.0
        %v2479 = vand.u32 %v1313, 4294901760
        %2480 = vmatpush.msra.mxu0 %v2479
        %v2481 = vand.u32 %v1311, 4294901760
        %2482 = vmatpush.msra.mxu0 %v2481
        %v2483 = vand.u32 %v2237, 4294901760
        %2484 = vmatmul.f32.gmra.mxu0 %v2483
        %v2485 = vpop.f32.mrf.mxu0
        %v2486 = vadd.f32 %v2451, %v2485
        %v2487 = vand.u32 %v2240, 4294901760
        %2488 = vmatmul.f32.gmra.mxu0 %v2487
        %v2489 = vpop.f32.mrf.mxu0
        %v2490 = vadd.f32 %v2455, %v2489
        %v2491 = vand.u32 %v2243, 4294901760
        %2492 = vmatmul.f32.gmra.mxu0 %v2491
        %v2493 = vpop.f32.mrf.mxu0
        %v2494 = vadd.f32 %v2459, %v2493
        %v2495 = vand.u32 %v2246, 4294901760
        %2496 = vmatmul.f32.gmra.mxu0 %v2495
        %v2497 = vpop.f32.mrf.mxu0
        %v2498 = vadd.f32 %v2463, %v2497
        %2499 = vdwg.mxu0
        %2500 = vmatpush.msra.mxu0 0.0
        %2501 = vmatpush.msra.mxu0 0.0
        %2502 = vmatpush.msra.mxu0 0.0
        %2503 = vmatpush.msra.mxu0 0.0
        %2504 = vmatpush.msra.mxu0 0.0
        %2505 = vmatpush.msra.mxu0 0.0
        %2506 = vmatpush.msra.mxu0 0.0
        %2507 = vmatpush.msra.mxu0 0.0
        %2508 = vmatpush.msra.mxu0 0.0
        %2509 = vmatpush.msra.mxu0 0.0
        %2510 = vmatpush.msra.mxu0 0.0
        %2511 = vmatpush.msra.mxu0 0.0
        %2512 = vmatpush.msra.mxu0 0.0
        %2513 = vmatpush.msra.mxu0 0.0
        %v2514 = vand.u32 %v1314, 4294901760
        %2515 = vmatpush.msra.mxu0 %v2514
        %v2516 = vand.u32 %v1312, 4294901760
        %2517 = vmatpush.msra.mxu0 %v2516
        %v2518 = vand.u32 %v2237, 4294901760
        %v2519 = vsub.f32 %v2237, %v2518
        %v2520 = vand.u32 %v2519, 4294901760
        %v2521 = vsub.f32 %v2519, %v2520
        %v2522 = vand.u32 %v2521, 4294901760
        %2523 = vmatmul.f32.gmra.mxu0 %v2522
        %v2524 = vpop.f32.mrf.mxu0
        %v2525 = vadd.f32 0.0, %v2524
        %v2526 = vand.u32 %v2240, 4294901760
        %v2527 = vsub.f32 %v2240, %v2526
        %v2528 = vand.u32 %v2527, 4294901760
        %v2529 = vsub.f32 %v2527, %v2528
        %v2530 = vand.u32 %v2529, 4294901760
        %2531 = vmatmul.f32.gmra.mxu0 %v2530
        %v2532 = vpop.f32.mrf.mxu0
        %v2533 = vadd.f32 0.0, %v2532
        %v2534 = vand.u32 %v2243, 4294901760
        %v2535 = vsub.f32 %v2243, %v2534
        %v2536 = vand.u32 %v2535, 4294901760
        %v2537 = vsub.f32 %v2535, %v2536
        %v2538 = vand.u32 %v2537, 4294901760
        %2539 = vmatmul.f32.gmra.mxu0 %v2538
        %v2540 = vpop.f32.mrf.mxu0
        %v2541 = vadd.f32 0.0, %v2540
        %v2542 = vand.u32 %v2246, 4294901760
        %v2543 = vsub.f32 %v2246, %v2542
        %v2544 = vand.u32 %v2543, 4294901760
        %v2545 = vsub.f32 %v2543, %v2544
        %v2546 = vand.u32 %v2545, 4294901760
        %2547 = vmatmul.f32.gmra.mxu0 %v2546
        %v2548 = vpop.f32.mrf.mxu0
        %v2549 = vadd.f32 0.0, %v2548
        %2550 = vdwg.mxu0
        %2551 = vmatpush.msra.mxu0 0.0
        %2552 = vmatpush.msra.mxu0 0.0
        %2553 = vmatpush.msra.mxu0 0.0
        %2554 = vmatpush.msra.mxu0 0.0
        %2555 = vmatpush.msra.mxu0 0.0
        %2556 = vmatpush.msra.mxu0 0.0
        %2557 = vmatpush.msra.mxu0 0.0
        %2558 = vmatpush.msra.mxu0 0.0
        %2559 = vmatpush.msra.mxu0 0.0
        %2560 = vmatpush.msra.mxu0 0.0
        %2561 = vmatpush.msra.mxu0 0.0
        %2562 = vmatpush.msra.mxu0 0.0
        %2563 = vmatpush.msra.mxu0 0.0
        %2564 = vmatpush.msra.mxu0 0.0
        %v2565 = vand.u32 %v1314, 4294901760
        %v2566 = vsub.f32 %v1314, %v2565
        %v2567 = vand.u32 %v2566, 4294901760
        %v2568 = vsub.f32 %v2566, %v2567
        %v2569 = vand.u32 %v2568, 4294901760
        %2570 = vmatpush.msra.mxu0 %v2569
        %v2571 = vand.u32 %v1312, 4294901760
        %v2572 = vsub.f32 %v1312, %v2571
        %v2573 = vand.u32 %v2572, 4294901760
        %v2574 = vsub.f32 %v2572, %v2573
        %v2575 = vand.u32 %v2574, 4294901760
        %2576 = vmatpush.msra.mxu0 %v2575
        %v2577 = vand.u32 %v2237, 4294901760
        %2578 = vmatmul.f32.gmra.mxu0 %v2577
        %v2579 = vpop.f32.mrf.mxu0
        %v2580 = vadd.f32 %v2525, %v2579
        %v2581 = vand.u32 %v2240, 4294901760
        %2582 = vmatmul.f32.gmra.mxu0 %v2581
        %v2583 = vpop.f32.mrf.mxu0
        %v2584 = vadd.f32 %v2533, %v2583
        %v2585 = vand.u32 %v2243, 4294901760
        %2586 = vmatmul.f32.gmra.mxu0 %v2585
        %v2587 = vpop.f32.mrf.mxu0
        %v2588 = vadd.f32 %v2541, %v2587
        %v2589 = vand.u32 %v2246, 4294901760
        %2590 = vmatmul.f32.gmra.mxu0 %v2589
        %v2591 = vpop.f32.mrf.mxu0
        %v2592 = vadd.f32 %v2549, %v2591
        %2593 = vdwg.mxu0
        %2594 = vmatpush.msra.mxu0 0.0
        %2595 = vmatpush.msra.mxu0 0.0
        %2596 = vmatpush.msra.mxu0 0.0
        %2597 = vmatpush.msra.mxu0 0.0
        %2598 = vmatpush.msra.mxu0 0.0
        %2599 = vmatpush.msra.mxu0 0.0
        %2600 = vmatpush.msra.mxu0 0.0
        %2601 = vmatpush.msra.mxu0 0.0
        %2602 = vmatpush.msra.mxu0 0.0
        %2603 = vmatpush.msra.mxu0 0.0
        %2604 = vmatpush.msra.mxu0 0.0
        %2605 = vmatpush.msra.mxu0 0.0
        %2606 = vmatpush.msra.mxu0 0.0
        %2607 = vmatpush.msra.mxu0 0.0
        %v2608 = vand.u32 %v1314, 4294901760
        %v2609 = vsub.f32 %v1314, %v2608
        %2610 = vmatpush.msra.mxu0 %v2609
        %v2611 = vand.u32 %v1312, 4294901760
        %v2612 = vsub.f32 %v1312, %v2611
        %2613 = vmatpush.msra.mxu0 %v2612
        %v2614 = vand.u32 %v2237, 4294901760
        %v2615 = vsub.f32 %v2237, %v2614
        %2616 = vmatmul.f32.gmra.mxu0 %v2615
        %v2617 = vpop.f32.mrf.mxu0
        %v2618 = vadd.f32 %v2580, %v2617
        %v2619 = vand.u32 %v2240, 4294901760
        %v2620 = vsub.f32 %v2240, %v2619
        %2621 = vmatmul.f32.gmra.mxu0 %v2620
        %v2622 = vpop.f32.mrf.mxu0
        %v2623 = vadd.f32 %v2584, %v2622
        %v2624 = vand.u32 %v2243, 4294901760
        %v2625 = vsub.f32 %v2243, %v2624
        %2626 = vmatmul.f32.gmra.mxu0 %v2625
        %v2627 = vpop.f32.mrf.mxu0
        %v2628 = vadd.f32 %v2588, %v2627
        %v2629 = vand.u32 %v2246, 4294901760
        %v2630 = vsub.f32 %v2246, %v2629
        %2631 = vmatmul.f32.gmra.mxu0 %v2630
        %v2632 = vpop.f32.mrf.mxu0
        %v2633 = vadd.f32 %v2592, %v2632
        %2634 = vdwg.mxu0
        %2635 = vmatpush.msra.mxu0 0.0
        %2636 = vmatpush.msra.mxu0 0.0
        %2637 = vmatpush.msra.mxu0 0.0
        %2638 = vmatpush.msra.mxu0 0.0
        %2639 = vmatpush.msra.mxu0 0.0
        %2640 = vmatpush.msra.mxu0 0.0
        %2641 = vmatpush.msra.mxu0 0.0
        %2642 = vmatpush.msra.mxu0 0.0
        %2643 = vmatpush.msra.mxu0 0.0
        %2644 = vmatpush.msra.mxu0 0.0
        %2645 = vmatpush.msra.mxu0 0.0
        %2646 = vmatpush.msra.mxu0 0.0
        %2647 = vmatpush.msra.mxu0 0.0
        %2648 = vmatpush.msra.mxu0 0.0
        %v2649 = vand.u32 %v1314, 4294901760
        %2650 = vmatpush.msra.mxu0 %v2649
        %v2651 = vand.u32 %v1312, 4294901760
        %2652 = vmatpush.msra.mxu0 %v2651
        %v2653 = vand.u32 %v2237, 4294901760
        %v2654 = vsub.f32 %v2237, %v2653
        %v2655 = vand.u32 %v2654, 4294901760
        %2656 = vmatmul.f32.gmra.mxu0 %v2655
        %v2657 = vpop.f32.mrf.mxu0
        %v2658 = vadd.f32 %v2618, %v2657
        %v2659 = vand.u32 %v2240, 4294901760
        %v2660 = vsub.f32 %v2240, %v2659
        %v2661 = vand.u32 %v2660, 4294901760
        %2662 = vmatmul.f32.gmra.mxu0 %v2661
        %v2663 = vpop.f32.mrf.mxu0
        %v2664 = vadd.f32 %v2623, %v2663
        %v2665 = vand.u32 %v2243, 4294901760
        %v2666 = vsub.f32 %v2243, %v2665
        %v2667 = vand.u32 %v2666, 4294901760
        %2668 = vmatmul.f32.gmra.mxu0 %v2667
        %v2669 = vpop.f32.mrf.mxu0
        %v2670 = vadd.f32 %v2628, %v2669
        %v2671 = vand.u32 %v2246, 4294901760
        %v2672 = vsub.f32 %v2246, %v2671
        %v2673 = vand.u32 %v2672, 4294901760
        %2674 = vmatmul.f32.gmra.mxu0 %v2673
        %v2675 = vpop.f32.mrf.mxu0
        %v2676 = vadd.f32 %v2633, %v2675
        %2677 = vdwg.mxu0
        %2678 = vmatpush.msra.mxu0 0.0
        %2679 = vmatpush.msra.mxu0 0.0
        %2680 = vmatpush.msra.mxu0 0.0
        %2681 = vmatpush.msra.mxu0 0.0
        %2682 = vmatpush.msra.mxu0 0.0
        %2683 = vmatpush.msra.mxu0 0.0
        %2684 = vmatpush.msra.mxu0 0.0
        %2685 = vmatpush.msra.mxu0 0.0
        %2686 = vmatpush.msra.mxu0 0.0
        %2687 = vmatpush.msra.mxu0 0.0
        %2688 = vmatpush.msra.mxu0 0.0
        %2689 = vmatpush.msra.mxu0 0.0
        %2690 = vmatpush.msra.mxu0 0.0
        %2691 = vmatpush.msra.mxu0 0.0
        %v2692 = vand.u32 %v1314, 4294901760
        %v2693 = vsub.f32 %v1314, %v2692
        %v2694 = vand.u32 %v2693, 4294901760
        %2695 = vmatpush.msra.mxu0 %v2694
        %v2696 = vand.u32 %v1312, 4294901760
        %v2697 = vsub.f32 %v1312, %v2696
        %v2698 = vand.u32 %v2697, 4294901760
        %2699 = vmatpush.msra.mxu0 %v2698
        %v2700 = vand.u32 %v2237, 4294901760
        %2701 = vmatmul.f32.gmra.mxu0 %v2700
        %v2702 = vpop.f32.mrf.mxu0
        %v2703 = vadd.f32 %v2658, %v2702
        %v2704 = vand.u32 %v2240, 4294901760
        %2705 = vmatmul.f32.gmra.mxu0 %v2704
        %v2706 = vpop.f32.mrf.mxu0
        %v2707 = vadd.f32 %v2664, %v2706
        %v2708 = vand.u32 %v2243, 4294901760
        %2709 = vmatmul.f32.gmra.mxu0 %v2708
        %v2710 = vpop.f32.mrf.mxu0
        %v2711 = vadd.f32 %v2670, %v2710
        %v2712 = vand.u32 %v2246, 4294901760
        %2713 = vmatmul.f32.gmra.mxu0 %v2712
        %v2714 = vpop.f32.mrf.mxu0
        %v2715 = vadd.f32 %v2676, %v2714
        %2716 = vdwg.mxu0
        %2717 = vmatpush.msra.mxu0 0.0
        %2718 = vmatpush.msra.mxu0 0.0
        %2719 = vmatpush.msra.mxu0 0.0
        %2720 = vmatpush.msra.mxu0 0.0
        %2721 = vmatpush.msra.mxu0 0.0
        %2722 = vmatpush.msra.mxu0 0.0
        %2723 = vmatpush.msra.mxu0 0.0
        %2724 = vmatpush.msra.mxu0 0.0
        %2725 = vmatpush.msra.mxu0 0.0
        %2726 = vmatpush.msra.mxu0 0.0
        %2727 = vmatpush.msra.mxu0 0.0
        %2728 = vmatpush.msra.mxu0 0.0
        %2729 = vmatpush.msra.mxu0 0.0
        %2730 = vmatpush.msra.mxu0 0.0
        %v2731 = vand.u32 %v1314, 4294901760
        %2732 = vmatpush.msra.mxu0 %v2731
        %v2733 = vand.u32 %v1312, 4294901760
        %2734 = vmatpush.msra.mxu0 %v2733
        %v2735 = vand.u32 %v2237, 4294901760
        %2736 = vmatmul.f32.gmra.mxu0 %v2735
        %v2737 = vpop.f32.mrf.mxu0
        %v2738 = vadd.f32 %v2703, %v2737
        %v2739 = vand.u32 %v2240, 4294901760
        %2740 = vmatmul.f32.gmra.mxu0 %v2739
        %v2741 = vpop.f32.mrf.mxu0
        %v2742 = vadd.f32 %v2707, %v2741
        %v2743 = vand.u32 %v2243, 4294901760
        %2744 = vmatmul.f32.gmra.mxu0 %v2743
        %v2745 = vpop.f32.mrf.mxu0
        %v2746 = vadd.f32 %v2711, %v2745
        %v2747 = vand.u32 %v2246, 4294901760
        %2748 = vmatmul.f32.gmra.mxu0 %v2747
        %v2749 = vpop.f32.mrf.mxu0
        %v2750 = vadd.f32 %v2715, %v2749
        %2751 = vdwg.mxu0
        %v2752 = vmul.f32 %v840, %v2486
        %v2753 = vmul.f32 %v1079, %v2738
        %v2754 = vmul.f32 %v844, %v2490
        %v2755 = vmul.f32 %v1083, %v2742
        %v2756 = vmul.f32 %v848, %v2494
        %v2757 = vmul.f32 %v1087, %v2746
        %v2758 = vmul.f32 %v852, %v2498
        %v2759 = vmul.f32 %v1091, %v2750
        %2760 = vst [vmem:[%s242] sm:$0xff] %v2752
        %2761 = vst [vmem:[%s242 + $0x8] sm:$0xff] %v2753
        %2762 = vst [vmem:[%s242 + $0x10] sm:$0xff] %v2754
        %2763 = vst [vmem:[%s242 + $0x18] sm:$0xff] %v2755
        %2764 = vst [vmem:[%s242 + $0x20] sm:$0xff] %v2756
        %2765 = vst [vmem:[%s242 + $0x28] sm:$0xff] %v2757
        %2766 = vst [vmem:[%s242 + $0x30] sm:$0xff] %v2758
        %2767 = vst [vmem:[%s242 + $0x38] sm:$0xff] %v2759
        %s2768 = sand.u32 %s153, 1
        %s2769 = scalar_lea.sflag [#allocation3], %s2768
        %s2770 = sand.u32 %s153, 1
        %s2771 = smul.addr %s2770, 64
        %s2772 = scalar_lea.vmem [#allocation2], %s2771
        // Predicated region
        $region41: #{tpu_custom_call.1} parent=39 // pred_check
          %p2773 = pneg %p163
        $region42: #{tpu_custom_call.1} parent=39 // pred_check_branch
          %2775 = sbr.rel (%p2773) target = $region44
        $region43: #{tpu_custom_call.1} parent=39 // pred_region
          %s2776 = smul.u32 2, %s24
          %2778 = vsyncadd %s2769, 0
          %s2779 = smul.addr %s23, 8
          %s2780 = sadd.s32 %s2776, %s2779
          %s2781 = smul.addr %s2780, 8
          %s2782 = scalar_lea.hbm %s5, %s2781
          %s2783 = sshll.u32 %s2772, 4
          %s2784 = int_to_ptr.vmem [resolvable:$true] %s2783
          %s2785 = sshll.u32 %s2782, 4
          %s2786 = int_to_ptr.hbm [resolvable:$true] %s2785
          %2791 = dma.vmem_to_hbm [thread:$0]  %s2784, 1024, %s2786, %s2769, 256, 256, 16
        $region44: #{tpu_custom_call.1} parent=39 // pred_fallthru
          _
      $region40: #{tpu_custom_call.1} parent=5 // pred_fallthru
        _
      %p2792 = scmp.le.s32.totalorder 2, %s14
      // Predicated region
      $region45: #{tpu_custom_call.1} parent=5 // pred_check
        %p2793 = pneg %p2792
      $region46: #{tpu_custom_call.1} parent=5 // pred_check_branch
        %2795 = sbr.rel (%p2793) target = $region48
      $region47: #{tpu_custom_call.1} parent=5 // pred_region
        %s2796 = ssub.s32 %s14, 2
        // Predicated region
        $region49: #{tpu_custom_call.1} parent=47 // pred_check
          %p2797 = pneg %p169
        $region50: #{tpu_custom_call.1} parent=47 // pred_check_branch
          %2799 = sbr.rel (%p2797) target = $region52
        $region51: #{tpu_custom_call.1} parent=47 // pred_region
          %s2800 = sand.u32 %s154, 1
          %s2801 = scalar_lea.sflag [#allocation3], %s2800
          %s2802 = sand.u32 %s154, 1
          %s2803 = smul.addr %s2802, 64
          %s2804 = scalar_lea.vmem [#allocation2], %s2803
          %2806 = dma.done %s2801, 1024
        $region52: #{tpu_custom_call.1} parent=47 // pred_fallthru
          _
      $region48: #{tpu_custom_call.1} parent=5 // pred_fallthru
        _
    $region6: #{tpu_custom_call.1} parent=1 // loop_footer
      %s18 = sadd.s32 1, %s14
    $region7: #{tpu_custom_call.1} parent=1 // loop_footer_branch
      %13 = sbr.rel target = $region3
    $region8: #{tpu_custom_call.1} parent=1 // loop_exit
      _
    %2807 = vsyncpa [#allocation3], 1
    %s2808 = scalar_lea.sflag [#allocation3], 1
    %2809 = vsyncpa %s2808, 1

</llo_original>
